<compile_context>
chip_gen: v6e
topology: v6e:2x2x1
jax: 0.10.0
libtpu: 0.0.40
codegen_flags: <defaults>
</compile_context>

<pallas_src>
import jax
import jax.numpy as jnp
import numpy as np
from jax.experimental import pallas as pl
from jax.experimental.pallas import tpu as pltpu


# ----------------------------- static geometry ------------------------------

def _layer_geometry(img_size, blocks):
    c, h, w = img_size
    dims = []
    cin = c
    for cout in blocks:
        dims.append((h, w, cin, cout))          # input geometry of this block
        h, w, cin = (h - 2) // 2, (w - 2) // 2, cout
    return tuple(dims), (h, w, cin)             # final (h, w, c) fed to the FC


def _const_index_map(ndim):
    zeros = (0,) * ndim
    return lambda g: zeros


# ----------------------------- fused kernel ----------------------------------

def _make_fused_kernel(layer_dims, num_classes, b_tile):
    n_layers = len(layer_dims)

    def kernel(*refs):
        x_ref = refs[0]
        lrefs = refs[1:1 + 6 * n_layers]
        wfc_ref, sfc_ref, bfc_ref = refs[1 + 6 * n_layers:4 + 6 * n_layers]
        o_ref = refs[4 + 6 * n_layers]

        # Stacked activations for B_TILE images: (b_tile*h, w*cin), f32.
        a = x_ref[...]
        for l, (h, w, cin, cout) in enumerate(layer_dims):
            wk, bt, sra, srb, sce, sco = lrefs[6 * l:6 * l + 6]
            ro = b_tile * h - 2          # stacked conv-output row count

            # 3x3 valid conv as three banded (width-Toeplitz) bf16 matmuls with
            # f32 accumulation.  Rows crossing image boundaries are garbage and
            # are never picked up by the pooling row-select matrices below.
            acc = jnp.dot(a[0:ro, :].astype(jnp.bfloat16), wk[0],
                          preferred_element_type=jnp.float32)
            acc = acc + jnp.dot(a[1:ro + 1, :].astype(jnp.bfloat16), wk[1],
                                preferred_element_type=jnp.float32)
            acc = acc + jnp.dot(a[2:ro + 2, :].astype(jnp.bfloat16), wk[2],
                                preferred_element_type=jnp.float32)

            # fused bias + ReLU epilogue (f32, VPU)
            y = jnp.maximum(acc + bt[...], 0.0)          # (ro, wo*cout)

            # 2x2 max-pool: prebuilt 0/1 selection matmuls, max on the small
            # pooled shapes only.
            pr = jnp.maximum(
                jnp.dot(sra[...], y, preferred_element_type=jnp.float32),
                jnp.dot(srb[...], y, preferred_element_type=jnp.float32))
            a = jnp.maximum(
                jnp.dot(pr, sce[...], preferred_element_type=jnp.float32),
                jnp.dot(pr, sco[...], preferred_element_type=jnp.float32))
            # a: (b_tile*h2, w2*cout)

        # Classifier head on the VPU: elementwise multiply with the per-image
        # tiled FC weight, lane reduce, then one small block-sum matmul to
        # collapse each image's hf rows.  (No M=1 MXU round-trips.)
        zs = []
        for o in range(num_classes):
            prod = a * wfc_ref[o]                               # (b_tile*hf, wf*cf)
            zs.append(jnp.sum(prod, axis=1, keepdims=True))     # (b_tile*hf, 1)
        cs = zs[0] if num_classes == 1 else jnp.concatenate(zs, axis=1)
        logits = jnp.dot(sfc_ref[...], cs,
                         preferred_element_type=jnp.float32) + bfc_ref[...]

        # TODO(synk): nn.Dropout(p=0.9) treated as inference-mode identity.
        if num_classes == 1:
            out = jax.nn.sigmoid(logits)
        else:
            out = jax.nn.softmax(logits, axis=-1)
        o_ref[...] = out.astype(o_ref.dtype)

    return kernel


# ----------------------------- wrapper ---------------------------------------

def make_forward(img_size, blocks, num_classes, b_tile=8):
    layer_dims, _ = _layer_geometry(img_size, blocks)
    h0, w0, c0, _ = layer_dims[0]
    kernel = _make_fused_kernel(layer_dims, num_classes, b_tile)

    @jax.jit
    def forward(x_nchw, prepped):
        n = x_nchw.shape[0]
        n_pad = ((n + b_tile - 1) // b_tile) * b_tile
        # NCHW -> per-image (H, W*C) layout; the only XLA-side data shuffle.
        x = jnp.transpose(x_nchw, (0, 2, 3, 1)).reshape(n, h0, w0 * c0)
        if n_pad != n:
            x = jnp.concatenate(
                [x, jnp.zeros((n_pad - n, h0, w0 * c0), x.dtype)], axis=0)
        x = x.reshape(n_pad * h0, w0 * c0)       # stacked slab
        num_blocks = n_pad // b_tile

        inputs = [x]
        in_specs = [pl.BlockSpec((b_tile * h0, w0 * c0), lambda g: (g, 0))]
        for layer_arrays in prepped["layers"]:
            for arr in layer_arrays:
                inputs.append(arr)
                in_specs.append(pl.BlockSpec(arr.shape, _const_index_map(arr.ndim)))
        for arr in (prepped["fc_w"], prepped["fc_s"], prepped["fc_b"]):
            inputs.append(arr)
            in_specs.append(pl.BlockSpec(arr.shape, _const_index_map(arr.ndim)))

        out = pl.pallas_call(
            kernel,
            out_shape=jax.ShapeDtypeStruct((n_pad, num_classes), jnp.float32),
            grid=(num_blocks,),
            in_specs=in_specs,
            out_specs=pl.BlockSpec((b_tile, num_classes), lambda g: (g, 0)),
            compiler_params=pltpu.CompilerParams(
                dimension_semantics=("parallel",)),
        )(*inputs)
        return out[:n]

    return forward


def prepare_params(params, img_size, blocks, b_tile):
    """One-time weight prep:
       * conv weights baked into banded width-Toeplitz matrices (per kh), bf16;
       * per-layer pooling row/column 0/1 selection matrices (built for the
         B_TILE-stacked row layout, so image-boundary garbage rows are skipped);
       * FC weight permuted to the kernel's (h, w*c) flatten order and tiled
         per image block, plus the per-image block-sum matrix."""
    layer_dims, (hf, wf, cf) = _layer_geometry(img_size, blocks)
    layers = []
    for (wt, b), (h, w, cin, cout) in zip(params["convs"], layer_dims):
        ho, wo = h - 2, w - 2
        h2, w2 = ho // 2, wo // 2

        mats = []
        for kh in range(3):
            m = jnp.zeros((w * cin, wo * cout), jnp.float32)
            for kw in range(3):
                # [(j+kw)*cin + c, j*cout + o] = wt[o, c, kh, kw]
                m = m + jnp.kron(jnp.eye(w, wo, k=-kw, dtype=jnp.float32),
                                 wt[:, :, kh, kw].T)
            mats.append(m)
        wk = jnp.stack(mats).astype(jnp.bfloat16)            # (3, w*cin, wo*cout)
        bt = jnp.tile(b, wo).reshape(1, wo * cout).astype(jnp.float32)

        # Row-pool selects over the stacked conv output (b_tile*h - 2 rows):
        # pooled row (image bi, p) takes conv rows bi*h + 2p and bi*h + 2p + 1.
        ro = b_tile * h - 2
        rr = np.arange(b_tile * h2)
        bi, pi = rr // h2, rr % h2
        sra = np.zeros((b_tile * h2, ro), np.float32)
        srb = np.zeros((b_tile * h2, ro), np.float32)
        sra[rr, bi * h + 2 * pi] = 1.0
        srb[rr, bi * h + 2 * pi + 1] = 1.0

        # Column-pool selects: conv column j*cout + o -> pooled column q*cout + o
        sce = np.zeros((wo * cout, w2 * cout), np.float32)
        sco = np.zeros((wo * cout, w2 * cout), np.float32)
        qq = np.arange(w2)
        for o in range(cout):
            sce[2 * qq * cout + o, qq * cout + o] = 1.0
            sco[(2 * qq + 1) * cout + o, qq * cout + o] = 1.0

        layers.append((wk, bt, jnp.asarray(sra), jnp.asarray(srb),
                       jnp.asarray(sce), jnp.asarray(sco)))

    num_classes = params["fc_w"].shape[0]
    fc_w = (params["fc_w"].reshape(num_classes, cf, hf, wf)
            .transpose(2, 3, 1, 0).reshape(hf, wf * cf, num_classes))
    # (num_classes, b_tile*hf, wf*cf): FC weight replicated per image block.
    fc_tiled = jnp.tile(jnp.transpose(fc_w, (2, 0, 1)), (1, b_tile, 1))
    fc_tiled = fc_tiled.astype(jnp.float32)
    # Per-image block-sum matrix: (b_tile, b_tile*hf)
    sfc = np.zeros((b_tile, b_tile * hf), np.float32)
    for bb in range(b_tile):
        sfc[bb, bb * hf:(bb + 1) * hf] = 1.0
    fc_b = params["fc_b"].reshape(1, num_classes).astype(jnp.float32)
    return {"layers": layers, "fc_w": fc_tiled,
            "fc_s": jnp.asarray(sfc), "fc_b": fc_b}


# ----------------------------- params / reference ----------------------------

def init_params(key, img_size, blocks, num_classes):
    chans = [img_size[0]] + list(blocks)
    params = {"convs": []}
    for i in range(len(blocks)):
        key, k1, k2 = jax.random.split(key, 3)
        w = 0.1 * jax.random.normal(k1, (chans[i + 1], chans[i], 3, 3), jnp.float32)
        b = 0.1 * jax.random.normal(k2, (chans[i + 1],), jnp.float32)
        params["convs"].append((w, b))
    h, w_ = img_size[1], img_size[2]
    for _ in blocks:
        h, w_ = (h - 2) // 2, (w_ - 2) // 2
    flat = blocks[-1] * h * w_
    key, k1, k2 = jax.random.split(key, 3)
    params["fc_w"] = 0.1 * jax.random.normal(k1, (num_classes, flat), jnp.float32)
    params["fc_b"] = 0.1 * jax.random.normal(k2, (num_classes,), jnp.float32)
    return params


def _reference_forward(x_nchw, params):
    # pure-jnp reference with PyTorch semantics, for a correctness check
    x = jnp.transpose(x_nchw, (0, 2, 3, 1))
    for (w, b) in params["convs"]:
        cout = w.shape[0]
        n, h, ww, c = x.shape
        ho, wo = h - 2, ww - 2
        cols = [x[:, i:i + ho, j:j + wo, :] for i in range(3) for j in range(3)]
        patches = jnp.concatenate(cols, axis=-1).reshape(n * ho * wo, 9 * c)
        w2d = jnp.transpose(w, (2, 3, 1, 0)).reshape(-1, cout)
        y = jnp.maximum(patches @ w2d + b[None, :], 0.0).reshape(n, ho, wo, cout)
        h2, w2 = ho // 2, wo // 2
        x = jnp.max(y[:, :2 * h2, :2 * w2, :].reshape(n, h2, 2, w2, 2, cout),
                    axis=(2, 4))
    x = jnp.transpose(x, (0, 3, 1, 2)).reshape(x.shape[0], -1)
    logits = x @ params["fc_w"].T + params["fc_b"][None, :]
    if params["fc_w"].shape[0] == 1:
        return jax.nn.sigmoid(logits)
    return jax.nn.softmax(logits, axis=-1)


if __name__ == "__main__":
    key = jax.random.PRNGKey(0)
    k_param, k_x = jax.random.split(key)

    img_size = (4, 16, 16)       # (C, H, W) as in PyTorch imgSize
    blocks = [8, 16]
    num_classes = 1
    batch = 16
    # 8 images x 16 rows = 128 stacked rows: fills the v5e MXU M dim; on
    # v6e/v7x bump to 16 (=256 rows).  batch/b_tile = 2 grid steps keeps both
    # v7x TensorCores busy under dimension_semantics=("parallel",).
    b_tile = 8

    params = init_params(k_param, img_size, blocks, num_classes)
    prepped = prepare_params(params, img_size, blocks, b_tile)
    forward = make_forward(img_size, blocks, num_classes, b_tile)

    x = jax.random.normal(k_x, (batch,) + img_size, jnp.float32)  # NCHW input

    out = jax.block_until_ready(forward(x, prepped))
    ref = _reference_forward(x, params)

    assert out.shape == (batch, num_classes), out.shape
    # tolerance relaxed slightly (bf16 MXU inputs with f32 accumulation)
    assert jnp.allclose(out, ref, atol=5e-3, rtol=5e-3), (out, ref)
    print("KERNEL_OK")
</pallas_src>

<mosaic_0001>
module attributes {stable_mosaic.version = 11 : i64} {
  func.func @kernel(%arg0: i32, %arg1: memref<128x64xf32, #tpu.memory_space<vmem>>, %arg2: memref<3x64x112xbf16, #tpu.memory_space<vmem>>, %arg3: memref<1x112xf32, #tpu.memory_space<vmem>>, %arg4: memref<56x126xf32, #tpu.memory_space<vmem>>, %arg5: memref<56x126xf32, #tpu.memory_space<vmem>>, %arg6: memref<112x56xf32, #tpu.memory_space<vmem>>, %arg7: memref<112x56xf32, #tpu.memory_space<vmem>>, %arg8: memref<3x56x80xbf16, #tpu.memory_space<vmem>>, %arg9: memref<1x80xf32, #tpu.memory_space<vmem>>, %arg10: memref<16x54xf32, #tpu.memory_space<vmem>>, %arg11: memref<16x54xf32, #tpu.memory_space<vmem>>, %arg12: memref<80x32xf32, #tpu.memory_space<vmem>>, %arg13: memref<80x32xf32, #tpu.memory_space<vmem>>, %arg14: memref<1x16x32xf32, #tpu.memory_space<vmem>>, %arg15: memref<8x16xf32, #tpu.memory_space<vmem>>, %arg16: memref<1x1xf32, #tpu.memory_space<vmem>>, %arg17: memref<8x1xf32, #tpu.memory_space<vmem>>) attributes {dimension_semantics = [#tpu.dimension_semantics<parallel>], iteration_bounds = array<i64: 2>, scalar_prefetch = 0 : i64, scratch_operands = 0 : i64, tpu.core_type = #tpu.core_type<tc>, window_params = [{transform_indices = @transform_0, window_bounds = array<i64: 128, 64>}, {pipeline_mode = #tpu.pipeline_mode<synchronous>, transform_indices = @transform_1, window_bounds = array<i64: 3, 64, 112>}, {pipeline_mode = #tpu.pipeline_mode<synchronous>, transform_indices = @transform_2, window_bounds = array<i64: 1, 112>}, {pipeline_mode = #tpu.pipeline_mode<synchronous>, transform_indices = @transform_3, window_bounds = array<i64: 56, 126>}, {pipeline_mode = #tpu.pipeline_mode<synchronous>, transform_indices = @transform_4, window_bounds = array<i64: 56, 126>}, {pipeline_mode = #tpu.pipeline_mode<synchronous>, transform_indices = @transform_5, window_bounds = array<i64: 112, 56>}, {pipeline_mode = #tpu.pipeline_mode<synchronous>, transform_indices = @transform_6, window_bounds = array<i64: 112, 56>}, {pipeline_mode = #tpu.pipeline_mode<synchronous>, transform_indices = @transform_7, window_bounds = array<i64: 3, 56, 80>}, {pipeline_mode = #tpu.pipeline_mode<synchronous>, transform_indices = @transform_8, window_bounds = array<i64: 1, 80>}, {pipeline_mode = #tpu.pipeline_mode<synchronous>, transform_indices = @transform_9, window_bounds = array<i64: 16, 54>}, {pipeline_mode = #tpu.pipeline_mode<synchronous>, transform_indices = @transform_10, window_bounds = array<i64: 16, 54>}, {pipeline_mode = #tpu.pipeline_mode<synchronous>, transform_indices = @transform_11, window_bounds = array<i64: 80, 32>}, {pipeline_mode = #tpu.pipeline_mode<synchronous>, transform_indices = @transform_12, window_bounds = array<i64: 80, 32>}, {pipeline_mode = #tpu.pipeline_mode<synchronous>, transform_indices = @transform_13, window_bounds = array<i64: 1, 16, 32>}, {pipeline_mode = #tpu.pipeline_mode<synchronous>, transform_indices = @transform_14, window_bounds = array<i64: 8, 16>}, {pipeline_mode = #tpu.pipeline_mode<synchronous>, transform_indices = @transform_15, window_bounds = array<i64: 1, 1>}, {transform_indices = @transform_16, window_bounds = array<i64: 8, 1>}]} {
    %c0 = arith.constant 0 : index
    %c0_0 = arith.constant 0 : index
    %0 = vector.load %arg1[%c0, %c0_0] : memref<128x64xf32, #tpu.memory_space<vmem>>, vector<128x64xf32>
    %1 = vector.extract_strided_slice %0 {offsets = [0, 0], sizes = [126, 64], strides = [1, 1]} : vector<128x64xf32> to vector<126x64xf32>
    %2 = arith.truncf %1 : vector<126x64xf32> to vector<126x64xbf16>
    %c0_1 = arith.constant 0 : index
    %c0_2 = arith.constant 0 : index
    %c0_3 = arith.constant 0 : index
    %3 = vector.load %arg2[%c0_1, %c0_2, %c0_3] : memref<3x64x112xbf16, #tpu.memory_space<vmem>>, vector<1x64x112xbf16>
    %4 = vector.shape_cast %3 : vector<1x64x112xbf16> to vector<64x112xbf16>
    %cst = arith.constant dense<0.000000e+00> : vector<126x112xf32>
    %5 = tpu.matmul %2, %4, %cst {dimension_numbers = #tpu.dot_dimension_numbers<[1], [0], [0], [1], [0, 0, 1, 1], [], []>} : vector<126x64xbf16>, vector<64x112xbf16>, vector<126x112xf32> -> vector<126x112xf32>
    %6 = vector.extract_strided_slice %0 {offsets = [1, 0], sizes = [126, 64], strides = [1, 1]} : vector<128x64xf32> to vector<126x64xf32>
    %7 = arith.truncf %6 : vector<126x64xf32> to vector<126x64xbf16>
    %c1 = arith.constant 1 : index
    %c0_4 = arith.constant 0 : index
    %c0_5 = arith.constant 0 : index
    %8 = vector.load %arg2[%c1, %c0_4, %c0_5] : memref<3x64x112xbf16, #tpu.memory_space<vmem>>, vector<1x64x112xbf16>
    %9 = vector.shape_cast %8 : vector<1x64x112xbf16> to vector<64x112xbf16>
    %cst_6 = arith.constant dense<0.000000e+00> : vector<126x112xf32>
    %10 = tpu.matmul %7, %9, %cst_6 {dimension_numbers = #tpu.dot_dimension_numbers<[1], [0], [0], [1], [0, 0, 1, 1], [], []>} : vector<126x64xbf16>, vector<64x112xbf16>, vector<126x112xf32> -> vector<126x112xf32>
    %11 = arith.addf %5, %10 : vector<126x112xf32>
    %12 = vector.extract_strided_slice %0 {offsets = [2, 0], sizes = [126, 64], strides = [1, 1]} : vector<128x64xf32> to vector<126x64xf32>
    %13 = arith.truncf %12 : vector<126x64xf32> to vector<126x64xbf16>
    %c2 = arith.constant 2 : index
    %c0_7 = arith.constant 0 : index
    %c0_8 = arith.constant 0 : index
    %14 = vector.load %arg2[%c2, %c0_7, %c0_8] : memref<3x64x112xbf16, #tpu.memory_space<vmem>>, vector<1x64x112xbf16>
    %15 = vector.shape_cast %14 : vector<1x64x112xbf16> to vector<64x112xbf16>
    %cst_9 = arith.constant dense<0.000000e+00> : vector<126x112xf32>
    %16 = tpu.matmul %13, %15, %cst_9 {dimension_numbers = #tpu.dot_dimension_numbers<[1], [0], [0], [1], [0, 0, 1, 1], [], []>} : vector<126x64xbf16>, vector<64x112xbf16>, vector<126x112xf32> -> vector<126x112xf32>
    %17 = arith.addf %11, %16 : vector<126x112xf32>
    %c0_10 = arith.constant 0 : index
    %c0_11 = arith.constant 0 : index
    %18 = vector.load %arg3[%c0_10, %c0_11] : memref<1x112xf32, #tpu.memory_space<vmem>>, vector<1x112xf32>
    %19 = vector.broadcast %18 : vector<1x112xf32> to vector<126x112xf32>
    %20 = arith.addf %17, %19 : vector<126x112xf32>
    %cst_12 = arith.constant 0.000000e+00 : f32
    %21 = vector.broadcast %cst_12 : f32 to vector<126x112xf32>
    %22 = arith.maximumf %20, %21 : vector<126x112xf32>
    %c0_13 = arith.constant 0 : index
    %c0_14 = arith.constant 0 : index
    %23 = vector.load %arg4[%c0_13, %c0_14] : memref<56x126xf32, #tpu.memory_space<vmem>>, vector<56x126xf32>
    %cst_15 = arith.constant dense<0.000000e+00> : vector<56x112xf32>
    %24 = tpu.matmul %23, %22, %cst_15 {dimension_numbers = #tpu.dot_dimension_numbers<[1], [0], [0], [1], [0, 0, 1, 1], [], []>} : vector<56x126xf32>, vector<126x112xf32>, vector<56x112xf32> -> vector<56x112xf32>
    %c0_16 = arith.constant 0 : index
    %c0_17 = arith.constant 0 : index
    %25 = vector.load %arg5[%c0_16, %c0_17] : memref<56x126xf32, #tpu.memory_space<vmem>>, vector<56x126xf32>
    %cst_18 = arith.constant dense<0.000000e+00> : vector<56x112xf32>
    %26 = tpu.matmul %25, %22, %cst_18 {dimension_numbers = #tpu.dot_dimension_numbers<[1], [0], [0], [1], [0, 0, 1, 1], [], []>} : vector<56x126xf32>, vector<126x112xf32>, vector<56x112xf32> -> vector<56x112xf32>
    %27 = arith.maximumf %24, %26 : vector<56x112xf32>
    %c0_19 = arith.constant 0 : index
    %c0_20 = arith.constant 0 : index
    %28 = vector.load %arg6[%c0_19, %c0_20] : memref<112x56xf32, #tpu.memory_space<vmem>>, vector<112x56xf32>
    %cst_21 = arith.constant dense<0.000000e+00> : vector<56x56xf32>
    %29 = tpu.matmul %27, %28, %cst_21 {dimension_numbers = #tpu.dot_dimension_numbers<[1], [0], [0], [1], [0, 0, 1, 1], [], []>} : vector<56x112xf32>, vector<112x56xf32>, vector<56x56xf32> -> vector<56x56xf32>
    %c0_22 = arith.constant 0 : index
    %c0_23 = arith.constant 0 : index
    %30 = vector.load %arg7[%c0_22, %c0_23] : memref<112x56xf32, #tpu.memory_space<vmem>>, vector<112x56xf32>
    %cst_24 = arith.constant dense<0.000000e+00> : vector<56x56xf32>
    %31 = tpu.matmul %27, %30, %cst_24 {dimension_numbers = #tpu.dot_dimension_numbers<[1], [0], [0], [1], [0, 0, 1, 1], [], []>} : vector<56x112xf32>, vector<112x56xf32>, vector<56x56xf32> -> vector<56x56xf32>
    %32 = arith.maximumf %29, %31 : vector<56x56xf32>
    %33 = vector.extract_strided_slice %32 {offsets = [0, 0], sizes = [54, 56], strides = [1, 1]} : vector<56x56xf32> to vector<54x56xf32>
    %34 = arith.truncf %33 : vector<54x56xf32> to vector<54x56xbf16>
    %c0_25 = arith.constant 0 : index
    %c0_26 = arith.constant 0 : index
    %c0_27 = arith.constant 0 : index
    %35 = vector.load %arg8[%c0_25, %c0_26, %c0_27] : memref<3x56x80xbf16, #tpu.memory_space<vmem>>, vector<1x56x80xbf16>
    %36 = vector.shape_cast %35 : vector<1x56x80xbf16> to vector<56x80xbf16>
    %cst_28 = arith.constant dense<0.000000e+00> : vector<54x80xf32>
    %37 = tpu.matmul %34, %36, %cst_28 {dimension_numbers = #tpu.dot_dimension_numbers<[1], [0], [0], [1], [0, 0, 1, 1], [], []>} : vector<54x56xbf16>, vector<56x80xbf16>, vector<54x80xf32> -> vector<54x80xf32>
    %38 = vector.extract_strided_slice %32 {offsets = [1, 0], sizes = [54, 56], strides = [1, 1]} : vector<56x56xf32> to vector<54x56xf32>
    %39 = arith.truncf %38 : vector<54x56xf32> to vector<54x56xbf16>
    %c1_29 = arith.constant 1 : index
    %c0_30 = arith.constant 0 : index
    %c0_31 = arith.constant 0 : index
    %40 = vector.load %arg8[%c1_29, %c0_30, %c0_31] : memref<3x56x80xbf16, #tpu.memory_space<vmem>>, vector<1x56x80xbf16>
    %41 = vector.shape_cast %40 : vector<1x56x80xbf16> to vector<56x80xbf16>
    %cst_32 = arith.constant dense<0.000000e+00> : vector<54x80xf32>
    %42 = tpu.matmul %39, %41, %cst_32 {dimension_numbers = #tpu.dot_dimension_numbers<[1], [0], [0], [1], [0, 0, 1, 1], [], []>} : vector<54x56xbf16>, vector<56x80xbf16>, vector<54x80xf32> -> vector<54x80xf32>
    %43 = arith.addf %37, %42 : vector<54x80xf32>
    %44 = vector.extract_strided_slice %32 {offsets = [2, 0], sizes = [54, 56], strides = [1, 1]} : vector<56x56xf32> to vector<54x56xf32>
    %45 = arith.truncf %44 : vector<54x56xf32> to vector<54x56xbf16>
    %c2_33 = arith.constant 2 : index
    %c0_34 = arith.constant 0 : index
    %c0_35 = arith.constant 0 : index
    %46 = vector.load %arg8[%c2_33, %c0_34, %c0_35] : memref<3x56x80xbf16, #tpu.memory_space<vmem>>, vector<1x56x80xbf16>
    %47 = vector.shape_cast %46 : vector<1x56x80xbf16> to vector<56x80xbf16>
    %cst_36 = arith.constant dense<0.000000e+00> : vector<54x80xf32>
    %48 = tpu.matmul %45, %47, %cst_36 {dimension_numbers = #tpu.dot_dimension_numbers<[1], [0], [0], [1], [0, 0, 1, 1], [], []>} : vector<54x56xbf16>, vector<56x80xbf16>, vector<54x80xf32> -> vector<54x80xf32>
    %49 = arith.addf %43, %48 : vector<54x80xf32>
    %c0_37 = arith.constant 0 : index
    %c0_38 = arith.constant 0 : index
    %50 = vector.load %arg9[%c0_37, %c0_38] : memref<1x80xf32, #tpu.memory_space<vmem>>, vector<1x80xf32>
    %51 = vector.broadcast %50 : vector<1x80xf32> to vector<54x80xf32>
    %52 = arith.addf %49, %51 : vector<54x80xf32>
    %cst_39 = arith.constant 0.000000e+00 : f32
    %53 = vector.broadcast %cst_39 : f32 to vector<54x80xf32>
    %54 = arith.maximumf %52, %53 : vector<54x80xf32>
    %c0_40 = arith.constant 0 : index
    %c0_41 = arith.constant 0 : index
    %55 = vector.load %arg10[%c0_40, %c0_41] : memref<16x54xf32, #tpu.memory_space<vmem>>, vector<16x54xf32>
    %cst_42 = arith.constant dense<0.000000e+00> : vector<16x80xf32>
    %56 = tpu.matmul %55, %54, %cst_42 {dimension_numbers = #tpu.dot_dimension_numbers<[1], [0], [0], [1], [0, 0, 1, 1], [], []>} : vector<16x54xf32>, vector<54x80xf32>, vector<16x80xf32> -> vector<16x80xf32>
    %c0_43 = arith.constant 0 : index
    %c0_44 = arith.constant 0 : index
    %57 = vector.load %arg11[%c0_43, %c0_44] : memref<16x54xf32, #tpu.memory_space<vmem>>, vector<16x54xf32>
    %cst_45 = arith.constant dense<0.000000e+00> : vector<16x80xf32>
    %58 = tpu.matmul %57, %54, %cst_45 {dimension_numbers = #tpu.dot_dimension_numbers<[1], [0], [0], [1], [0, 0, 1, 1], [], []>} : vector<16x54xf32>, vector<54x80xf32>, vector<16x80xf32> -> vector<16x80xf32>
    %59 = arith.maximumf %56, %58 : vector<16x80xf32>
    %c0_46 = arith.constant 0 : index
    %c0_47 = arith.constant 0 : index
    %60 = vector.load %arg12[%c0_46, %c0_47] : memref<80x32xf32, #tpu.memory_space<vmem>>, vector<80x32xf32>
    %cst_48 = arith.constant dense<0.000000e+00> : vector<16x32xf32>
    %61 = tpu.matmul %59, %60, %cst_48 {dimension_numbers = #tpu.dot_dimension_numbers<[1], [0], [0], [1], [0, 0, 1, 1], [], []>} : vector<16x80xf32>, vector<80x32xf32>, vector<16x32xf32> -> vector<16x32xf32>
    %c0_49 = arith.constant 0 : index
    %c0_50 = arith.constant 0 : index
    %62 = vector.load %arg13[%c0_49, %c0_50] : memref<80x32xf32, #tpu.memory_space<vmem>>, vector<80x32xf32>
    %cst_51 = arith.constant dense<0.000000e+00> : vector<16x32xf32>
    %63 = tpu.matmul %59, %62, %cst_51 {dimension_numbers = #tpu.dot_dimension_numbers<[1], [0], [0], [1], [0, 0, 1, 1], [], []>} : vector<16x80xf32>, vector<80x32xf32>, vector<16x32xf32> -> vector<16x32xf32>
    %64 = arith.maximumf %61, %63 : vector<16x32xf32>
    %c0_52 = arith.constant 0 : index
    %c0_53 = arith.constant 0 : index
    %c0_54 = arith.constant 0 : index
    %65 = vector.load %arg14[%c0_52, %c0_53, %c0_54] : memref<1x16x32xf32, #tpu.memory_space<vmem>>, vector<1x16x32xf32>
    %66 = vector.shape_cast %65 : vector<1x16x32xf32> to vector<16x32xf32>
    %67 = arith.mulf %64, %66 : vector<16x32xf32>
    %cst_55 = arith.constant dense<0.000000e+00> : vector<16xf32>
    %68 = vector.multi_reduction <add>, %67, %cst_55 [1] : vector<16x32xf32> to vector<16xf32>
    %69 = vector.shape_cast %68 : vector<16xf32> to vector<16x1xf32>
    %c0_56 = arith.constant 0 : index
    %c0_57 = arith.constant 0 : index
    %70 = vector.load %arg15[%c0_56, %c0_57] : memref<8x16xf32, #tpu.memory_space<vmem>>, vector<8x16xf32>
    %cst_58 = arith.constant dense<0.000000e+00> : vector<8x1xf32>
    %71 = tpu.matmul %70, %69, %cst_58 {dimension_numbers = #tpu.dot_dimension_numbers<[1], [0], [0], [1], [0, 0, 1, 1], [], []>} : vector<8x16xf32>, vector<16x1xf32>, vector<8x1xf32> -> vector<8x1xf32>
    %c0_59 = arith.constant 0 : index
    %c0_60 = arith.constant 0 : index
    %72 = vector.load %arg16[%c0_59, %c0_60] : memref<1x1xf32, #tpu.memory_space<vmem>>, vector<1x1xf32>
    %73 = vector.broadcast %72 : vector<1x1xf32> to vector<8x1xf32>
    %74 = arith.addf %71, %73 : vector<8x1xf32>
    %75 = arith.negf %74 : vector<8x1xf32>
    %76 = math.exp %75 : vector<8x1xf32>
    %cst_61 = arith.constant 1.000000e+00 : f32
    %77 = vector.broadcast %cst_61 : f32 to vector<8x1xf32>
    %78 = arith.addf %77, %76 : vector<8x1xf32>
    %79 = arith.divf %77, %78 : vector<8x1xf32>
    %c0_62 = arith.constant 0 : index
    %c0_63 = arith.constant 0 : index
    %80 = vector.load %arg17[%c0_62, %c0_63] : memref<8x1xf32, #tpu.memory_space<vmem>>, vector<8x1xf32>
    tpu.vector_store %arg17[%c0_62, %c0_63], %79 {strides = array<i32>} : memref<8x1xf32, #tpu.memory_space<vmem>>, vector<8x1xf32>,
    return
  }
  func.func @transform_0(%arg0: i32) -> (i32, i32) {
    %c0_i32 = arith.constant 0 : i32
    %c0_i32_0 = arith.constant 0 : i32
    return %arg0, %c0_i32 : i32, i32
  }
  func.func @transform_1(%arg0: i32) -> (i32, i32, i32) {
    %c0_i32 = arith.constant 0 : i32
    %c0_i32_0 = arith.constant 0 : i32
    %c0_i32_1 = arith.constant 0 : i32
    %c0_i32_2 = arith.constant 0 : i32
    return %c0_i32, %c0_i32_0, %c0_i32_1 : i32, i32, i32
  }
  func.func @transform_2(%arg0: i32) -> (i32, i32) {
    %c0_i32 = arith.constant 0 : i32
    %c0_i32_0 = arith.constant 0 : i32
    %c0_i32_1 = arith.constant 0 : i32
    return %c0_i32, %c0_i32_0 : i32, i32
  }
  func.func @transform_3(%arg0: i32) -> (i32, i32) {
    %c0_i32 = arith.constant 0 : i32
    %c0_i32_0 = arith.constant 0 : i32
    %c0_i32_1 = arith.constant 0 : i32
    return %c0_i32, %c0_i32_0 : i32, i32
  }
  func.func @transform_4(%arg0: i32) -> (i32, i32) {
    %c0_i32 = arith.constant 0 : i32
    %c0_i32_0 = arith.constant 0 : i32
    %c0_i32_1 = arith.constant 0 : i32
    return %c0_i32, %c0_i32_0 : i32, i32
  }
  func.func @transform_5(%arg0: i32) -> (i32, i32) {
    %c0_i32 = arith.constant 0 : i32
    %c0_i32_0 = arith.constant 0 : i32
    %c0_i32_1 = arith.constant 0 : i32
    return %c0_i32, %c0_i32_0 : i32, i32
  }
  func.func @transform_6(%arg0: i32) -> (i32, i32) {
    %c0_i32 = arith.constant 0 : i32
    %c0_i32_0 = arith.constant 0 : i32
    %c0_i32_1 = arith.constant 0 : i32
    return %c0_i32, %c0_i32_0 : i32, i32
  }
  func.func @transform_7(%arg0: i32) -> (i32, i32, i32) {
    %c0_i32 = arith.constant 0 : i32
    %c0_i32_0 = arith.constant 0 : i32
    %c0_i32_1 = arith.constant 0 : i32
    %c0_i32_2 = arith.constant 0 : i32
    return %c0_i32, %c0_i32_0, %c0_i32_1 : i32, i32, i32
  }
  func.func @transform_8(%arg0: i32) -> (i32, i32) {
    %c0_i32 = arith.constant 0 : i32
    %c0_i32_0 = arith.constant 0 : i32
    %c0_i32_1 = arith.constant 0 : i32
    return %c0_i32, %c0_i32_0 : i32, i32
  }
  func.func @transform_9(%arg0: i32) -> (i32, i32) {
    %c0_i32 = arith.constant 0 : i32
    %c0_i32_0 = arith.constant 0 : i32
    %c0_i32_1 = arith.constant 0 : i32
    return %c0_i32, %c0_i32_0 : i32, i32
  }
  func.func @transform_10(%arg0: i32) -> (i32, i32) {
    %c0_i32 = arith.constant 0 : i32
    %c0_i32_0 = arith.constant 0 : i32
    %c0_i32_1 = arith.constant 0 : i32
    return %c0_i32, %c0_i32_0 : i32, i32
  }
  func.func @transform_11(%arg0: i32) -> (i32, i32) {
    %c0_i32 = arith.constant 0 : i32
    %c0_i32_0 = arith.constant 0 : i32
    %c0_i32_1 = arith.constant 0 : i32
    return %c0_i32, %c0_i32_0 : i32, i32
  }
  func.func @transform_12(%arg0: i32) -> (i32, i32) {
    %c0_i32 = arith.constant 0 : i32
    %c0_i32_0 = arith.constant 0 : i32
    %c0_i32_1 = arith.constant 0 : i32
    return %c0_i32, %c0_i32_0 : i32, i32
  }
  func.func @transform_13(%arg0: i32) -> (i32, i32, i32) {
    %c0_i32 = arith.constant 0 : i32
    %c0_i32_0 = arith.constant 0 : i32
    %c0_i32_1 = arith.constant 0 : i32
    %c0_i32_2 = arith.constant 0 : i32
    return %c0_i32, %c0_i32_0, %c0_i32_1 : i32, i32, i32
  }
  func.func @transform_14(%arg0: i32) -> (i32, i32) {
    %c0_i32 = arith.constant 0 : i32
    %c0_i32_0 = arith.constant 0 : i32
    %c0_i32_1 = arith.constant 0 : i32
    return %c0_i32, %c0_i32_0 : i32, i32
  }
  func.func @transform_15(%arg0: i32) -> (i32, i32) {
    %c0_i32 = arith.constant 0 : i32
    %c0_i32_0 = arith.constant 0 : i32
    %c0_i32_1 = arith.constant 0 : i32
    return %c0_i32, %c0_i32_0 : i32, i32
  }
  func.func @transform_16(%arg0: i32) -> (i32, i32) {
    %c0_i32 = arith.constant 0 : i32
    %c0_i32_0 = arith.constant 0 : i32
    return %arg0, %c0_i32 : i32, i32
  }
}

</mosaic_0001>

<llo_original>
// kernel: forward.1
$region0: #{forward.1}
  #allocation0 [shape = 'u32[]', space=smem, size = 0x4, offset = 0x4, fixed_abs, tag = 'smem constant byte address 0x4 - core index']
  #allocation1 [shape = 'u32[144,128]{1,0:T(1,128)}', space=vmem, size = 0x12000, scoped, tag = 'internal scratch']
  #allocation2 [shape = 'f32[1,1]{1,0:T(1,128)S(1)}', space=vmem, size = 0x200, scoped, tag = 'scoped memory for forward.1']
  %s0 = inlined_call_operand.vmem [shape: f32[256,64], index: 0, kind: input, shape index: {}]
  %s1 = inlined_call_operand.vmem [shape: bf16[3,64,112], index: 1, kind: input, shape index: {}]
  %s2 = inlined_call_operand.vmem [shape: f32[1,112], index: 2, kind: input, shape index: {}]
  %s3 = inlined_call_operand.vmem [shape: f32[56,126], index: 3, kind: input, shape index: {}]
  %s4 = inlined_call_operand.vmem [shape: f32[56,126], index: 4, kind: input, shape index: {}]
  %s5 = inlined_call_operand.vmem [shape: f32[112,56], index: 5, kind: input, shape index: {}]
  %s6 = inlined_call_operand.vmem [shape: f32[112,56], index: 6, kind: input, shape index: {}]
  %s7 = inlined_call_operand.vmem [shape: bf16[3,56,80], index: 7, kind: input, shape index: {}]
  %s8 = inlined_call_operand.vmem [shape: f32[1,80], index: 8, kind: input, shape index: {}]
  %s9 = inlined_call_operand.vmem [shape: f32[16,54], index: 9, kind: input, shape index: {}]
  %s10 = inlined_call_operand.vmem [shape: f32[16,54], index: 10, kind: input, shape index: {}]
  %s11 = inlined_call_operand.vmem [shape: f32[80,32], index: 11, kind: input, shape index: {}]
  %s12 = inlined_call_operand.vmem [shape: f32[80,32], index: 12, kind: input, shape index: {}]
  %s13 = inlined_call_operand.vmem [shape: f32[1,16,32], index: 13, kind: input, shape index: {}]
  %s14 = inlined_call_operand.vmem [shape: f32[8,16], index: 14, kind: input, shape index: {}]
  %s15 = inlined_call_operand.<no memory space> [shape: f32[1,1], index: 15, kind: input, shape index: {}]
  %s16 = inlined_call_operand.vmem [shape: f32[16,1], index: 16, kind: output, shape index: {}]
  %s17 = sld [smem:[#allocation0]]
  $region97: #{forward.1} parent=0
    _
  %s19 = ssub.s32 1, %s17
  %s20 = scalar_select 0, %s19, %s17
  %v21 = vstv %s15
  %22 = vst [vmem:[#allocation2] sm:$0x1] %v21
  loop: start=0, step=1, limit=4
  $region2: #{forward.1} parent=0 // loop_pre_header
    _
  $region3: #{forward.1} parent=0 // loop_header
    %s24 = sphi 0, %s28
    %p25 = scmp.ge.s32.totalorder %s24, 4
    %s34 = sphi 0, %s36
    %s37 = sphi 0, %s34
    %s38 = sphi 0, %s37
    %s54 = sphi 0, %s38
    %s58 = sphi 0, %s58
    %s60 = sphi 0, %s58
    %s61 = sphi 0, %s60
    %s75 = sphi 0, %s61
    %s79 = sphi 0, %s79
    %s81 = sphi 0, %s79
    %s82 = sphi 0, %s81
    %s96 = sphi 0, %s82
    %s100 = sphi 0, %s100
    %s102 = sphi 0, %s100
    %s103 = sphi 0, %s102
    %s117 = sphi 0, %s103
    %s121 = sphi 0, %s121
    %s123 = sphi 0, %s121
    %s124 = sphi 0, %s123
    %s138 = sphi 0, %s124
    %s142 = sphi 0, %s142
    %s144 = sphi 0, %s142
    %s145 = sphi 0, %s144
    %s159 = sphi 0, %s145
    %s163 = sphi 0, %s163
    %s165 = sphi 0, %s163
    %s166 = sphi 0, %s165
    %s180 = sphi 0, %s166
    %s184 = sphi 0, %s184
    %s186 = sphi 0, %s184
    %s187 = sphi 0, %s186
    %s201 = sphi 0, %s187
    %s205 = sphi 0, %s205
    %s207 = sphi 0, %s205
    %s208 = sphi 0, %s207
    %s222 = sphi 0, %s208
    %s226 = sphi 0, %s226
    %s228 = sphi 0, %s226
    %s229 = sphi 0, %s228
    %s243 = sphi 0, %s229
    %s247 = sphi 0, %s247
    %s249 = sphi 0, %s247
    %s250 = sphi 0, %s249
    %s264 = sphi 0, %s250
    %s268 = sphi 0, %s268
    %s270 = sphi 0, %s268
    %s271 = sphi 0, %s270
    %s285 = sphi 0, %s271
    %s289 = sphi 0, %s289
    %s291 = sphi 0, %s289
    %s292 = sphi 0, %s291
    %s306 = sphi 0, %s292
    %s310 = sphi 0, %s310
    %s312 = sphi 0, %s310
    %s313 = sphi 0, %s312
    %s327 = sphi 0, %s313
    %s331 = sphi 0, %s331
    %s333 = sphi 0, %s331
    %s334 = sphi 0, %s333
    %s348 = sphi 0, %s334
    %s352 = sphi 0, %s352
    %s354 = sphi 0, %s352
    %s355 = sphi 0, %s354
    %s369 = sphi 0, %s355
    %s375 = sphi 0, %s377
    %s378 = sphi 0, %s375
    %s379 = sphi 0, %s378
    %s395 = sphi 0, %s379
  $region4: #{forward.1} parent=0 // loop_header_branch
    %27 = sbr.rel (%p25) target = $region8
  $region5: #{forward.1} parent=0 // loop_body
    %s29 = ssub.s32 %s24, 1
    %s30 = ssub.s32 %s24, 2
    %s31 = sadd.s32 %s24, 1
    %s32 = ssub.s32 %s24, %s31
    %p33 = scmp.eq.s32.totalorder %s32, 0
    %s35 = sadd.s32 %s34, 1
    %s36 = scalar_select %p33, %s34, %s35
    %p39 = pneg %p33
    %p40 = scmp.eq.s32.totalorder %s24, 1
    %p41 = por %p39, %p40
    %p42 = scmp.ne.s32.totalorder %s34, %s37
    %p43 = scmp.eq.s32.totalorder %s24, 0
    %p44 = por %p42, %p43
    %p45 = scmp.ne.s32.totalorder %s34, %s37
    %p46 = scmp.eq.s32.totalorder %s29, 1
    %p47 = por %p45, %p46
    %p48 = scmp.ne.s32.totalorder %s37, %s38
    %p49 = scmp.eq.s32.totalorder %s29, 0
    %p50 = por %p48, %p49
    %p51 = scmp.ne.s32.totalorder %s37, %s38
    %p52 = scmp.eq.s32.totalorder %s30, 1
    %p53 = por %p51, %p52
    %p55 = scmp.ne.s32.totalorder %s38, %s54
    %p56 = scmp.eq.s32.totalorder %s30, 0
    %p57 = por %p55, %p56
    %s59 = sadd.s32 %s58, 1
    %p62 = scmp.eq.s32.totalorder %s24, 1
    %p63 = scmp.ne.s32.totalorder %s58, %s60
    %p64 = scmp.eq.s32.totalorder %s24, 0
    %p65 = por %p63, %p64
    %p66 = scmp.ne.s32.totalorder %s58, %s60
    %p67 = scmp.eq.s32.totalorder %s29, 1
    %p68 = por %p66, %p67
    %p69 = scmp.ne.s32.totalorder %s60, %s61
    %p70 = scmp.eq.s32.totalorder %s29, 0
    %p71 = por %p69, %p70
    %p72 = scmp.ne.s32.totalorder %s60, %s61
    %p73 = scmp.eq.s32.totalorder %s30, 1
    %p74 = por %p72, %p73
    %p76 = scmp.ne.s32.totalorder %s61, %s75
    %p77 = scmp.eq.s32.totalorder %s30, 0
    %p78 = por %p76, %p77
    %s80 = sadd.s32 %s79, 1
    %p83 = scmp.eq.s32.totalorder %s24, 1
    %p84 = scmp.ne.s32.totalorder %s79, %s81
    %p85 = scmp.eq.s32.totalorder %s24, 0
    %p86 = por %p84, %p85
    %p87 = scmp.ne.s32.totalorder %s79, %s81
    %p88 = scmp.eq.s32.totalorder %s29, 1
    %p89 = por %p87, %p88
    %p90 = scmp.ne.s32.totalorder %s81, %s82
    %p91 = scmp.eq.s32.totalorder %s29, 0
    %p92 = por %p90, %p91
    %p93 = scmp.ne.s32.totalorder %s81, %s82
    %p94 = scmp.eq.s32.totalorder %s30, 1
    %p95 = por %p93, %p94
    %p97 = scmp.ne.s32.totalorder %s82, %s96
    %p98 = scmp.eq.s32.totalorder %s30, 0
    %p99 = por %p97, %p98
    %s101 = sadd.s32 %s100, 1
    %p104 = scmp.eq.s32.totalorder %s24, 1
    %p105 = scmp.ne.s32.totalorder %s100, %s102
    %p106 = scmp.eq.s32.totalorder %s24, 0
    %p107 = por %p105, %p106
    %p108 = scmp.ne.s32.totalorder %s100, %s102
    %p109 = scmp.eq.s32.totalorder %s29, 1
    %p110 = por %p108, %p109
    %p111 = scmp.ne.s32.totalorder %s102, %s103
    %p112 = scmp.eq.s32.totalorder %s29, 0
    %p113 = por %p111, %p112
    %p114 = scmp.ne.s32.totalorder %s102, %s103
    %p115 = scmp.eq.s32.totalorder %s30, 1
    %p116 = por %p114, %p115
    %p118 = scmp.ne.s32.totalorder %s103, %s117
    %p119 = scmp.eq.s32.totalorder %s30, 0
    %p120 = por %p118, %p119
    %s122 = sadd.s32 %s121, 1
    %p125 = scmp.eq.s32.totalorder %s24, 1
    %p126 = scmp.ne.s32.totalorder %s121, %s123
    %p127 = scmp.eq.s32.totalorder %s24, 0
    %p128 = por %p126, %p127
    %p129 = scmp.ne.s32.totalorder %s121, %s123
    %p130 = scmp.eq.s32.totalorder %s29, 1
    %p131 = por %p129, %p130
    %p132 = scmp.ne.s32.totalorder %s123, %s124
    %p133 = scmp.eq.s32.totalorder %s29, 0
    %p134 = por %p132, %p133
    %p135 = scmp.ne.s32.totalorder %s123, %s124
    %p136 = scmp.eq.s32.totalorder %s30, 1
    %p137 = por %p135, %p136
    %p139 = scmp.ne.s32.totalorder %s124, %s138
    %p140 = scmp.eq.s32.totalorder %s30, 0
    %p141 = por %p139, %p140
    %s143 = sadd.s32 %s142, 1
    %p146 = scmp.eq.s32.totalorder %s24, 1
    %p147 = scmp.ne.s32.totalorder %s142, %s144
    %p148 = scmp.eq.s32.totalorder %s24, 0
    %p149 = por %p147, %p148
    %p150 = scmp.ne.s32.totalorder %s142, %s144
    %p151 = scmp.eq.s32.totalorder %s29, 1
    %p152 = por %p150, %p151
    %p153 = scmp.ne.s32.totalorder %s144, %s145
    %p154 = scmp.eq.s32.totalorder %s29, 0
    %p155 = por %p153, %p154
    %p156 = scmp.ne.s32.totalorder %s144, %s145
    %p157 = scmp.eq.s32.totalorder %s30, 1
    %p158 = por %p156, %p157
    %p160 = scmp.ne.s32.totalorder %s145, %s159
    %p161 = scmp.eq.s32.totalorder %s30, 0
    %p162 = por %p160, %p161
    %s164 = sadd.s32 %s163, 1
    %p167 = scmp.eq.s32.totalorder %s24, 1
    %p168 = scmp.ne.s32.totalorder %s163, %s165
    %p169 = scmp.eq.s32.totalorder %s24, 0
    %p170 = por %p168, %p169
    %p171 = scmp.ne.s32.totalorder %s163, %s165
    %p172 = scmp.eq.s32.totalorder %s29, 1
    %p173 = por %p171, %p172
    %p174 = scmp.ne.s32.totalorder %s165, %s166
    %p175 = scmp.eq.s32.totalorder %s29, 0
    %p176 = por %p174, %p175
    %p177 = scmp.ne.s32.totalorder %s165, %s166
    %p178 = scmp.eq.s32.totalorder %s30, 1
    %p179 = por %p177, %p178
    %p181 = scmp.ne.s32.totalorder %s166, %s180
    %p182 = scmp.eq.s32.totalorder %s30, 0
    %p183 = por %p181, %p182
    %s185 = sadd.s32 %s184, 1
    %p188 = scmp.eq.s32.totalorder %s24, 1
    %p189 = scmp.ne.s32.totalorder %s184, %s186
    %p190 = scmp.eq.s32.totalorder %s24, 0
    %p191 = por %p189, %p190
    %p192 = scmp.ne.s32.totalorder %s184, %s186
    %p193 = scmp.eq.s32.totalorder %s29, 1
    %p194 = por %p192, %p193
    %p195 = scmp.ne.s32.totalorder %s186, %s187
    %p196 = scmp.eq.s32.totalorder %s29, 0
    %p197 = por %p195, %p196
    %p198 = scmp.ne.s32.totalorder %s186, %s187
    %p199 = scmp.eq.s32.totalorder %s30, 1
    %p200 = por %p198, %p199
    %p202 = scmp.ne.s32.totalorder %s187, %s201
    %p203 = scmp.eq.s32.totalorder %s30, 0
    %p204 = por %p202, %p203
    %s206 = sadd.s32 %s205, 1
    %p209 = scmp.eq.s32.totalorder %s24, 1
    %p210 = scmp.ne.s32.totalorder %s205, %s207
    %p211 = scmp.eq.s32.totalorder %s24, 0
    %p212 = por %p210, %p211
    %p213 = scmp.ne.s32.totalorder %s205, %s207
    %p214 = scmp.eq.s32.totalorder %s29, 1
    %p215 = por %p213, %p214
    %p216 = scmp.ne.s32.totalorder %s207, %s208
    %p217 = scmp.eq.s32.totalorder %s29, 0
    %p218 = por %p216, %p217
    %p219 = scmp.ne.s32.totalorder %s207, %s208
    %p220 = scmp.eq.s32.totalorder %s30, 1
    %p221 = por %p219, %p220
    %p223 = scmp.ne.s32.totalorder %s208, %s222
    %p224 = scmp.eq.s32.totalorder %s30, 0
    %p225 = por %p223, %p224
    %s227 = sadd.s32 %s226, 1
    %p230 = scmp.eq.s32.totalorder %s24, 1
    %p231 = scmp.ne.s32.totalorder %s226, %s228
    %p232 = scmp.eq.s32.totalorder %s24, 0
    %p233 = por %p231, %p232
    %p234 = scmp.ne.s32.totalorder %s226, %s228
    %p235 = scmp.eq.s32.totalorder %s29, 1
    %p236 = por %p234, %p235
    %p237 = scmp.ne.s32.totalorder %s228, %s229
    %p238 = scmp.eq.s32.totalorder %s29, 0
    %p239 = por %p237, %p238
    %p240 = scmp.ne.s32.totalorder %s228, %s229
    %p241 = scmp.eq.s32.totalorder %s30, 1
    %p242 = por %p240, %p241
    %p244 = scmp.ne.s32.totalorder %s229, %s243
    %p245 = scmp.eq.s32.totalorder %s30, 0
    %p246 = por %p244, %p245
    %s248 = sadd.s32 %s247, 1
    %p251 = scmp.eq.s32.totalorder %s24, 1
    %p252 = scmp.ne.s32.totalorder %s247, %s249
    %p253 = scmp.eq.s32.totalorder %s24, 0
    %p254 = por %p252, %p253
    %p255 = scmp.ne.s32.totalorder %s247, %s249
    %p256 = scmp.eq.s32.totalorder %s29, 1
    %p257 = por %p255, %p256
    %p258 = scmp.ne.s32.totalorder %s249, %s250
    %p259 = scmp.eq.s32.totalorder %s29, 0
    %p260 = por %p258, %p259
    %p261 = scmp.ne.s32.totalorder %s249, %s250
    %p262 = scmp.eq.s32.totalorder %s30, 1
    %p263 = por %p261, %p262
    %p265 = scmp.ne.s32.totalorder %s250, %s264
    %p266 = scmp.eq.s32.totalorder %s30, 0
    %p267 = por %p265, %p266
    %s269 = sadd.s32 %s268, 1
    %p272 = scmp.eq.s32.totalorder %s24, 1
    %p273 = scmp.ne.s32.totalorder %s268, %s270
    %p274 = scmp.eq.s32.totalorder %s24, 0
    %p275 = por %p273, %p274
    %p276 = scmp.ne.s32.totalorder %s268, %s270
    %p277 = scmp.eq.s32.totalorder %s29, 1
    %p278 = por %p276, %p277
    %p279 = scmp.ne.s32.totalorder %s270, %s271
    %p280 = scmp.eq.s32.totalorder %s29, 0
    %p281 = por %p279, %p280
    %p282 = scmp.ne.s32.totalorder %s270, %s271
    %p283 = scmp.eq.s32.totalorder %s30, 1
    %p284 = por %p282, %p283
    %p286 = scmp.ne.s32.totalorder %s271, %s285
    %p287 = scmp.eq.s32.totalorder %s30, 0
    %p288 = por %p286, %p287
    %s290 = sadd.s32 %s289, 1
    %p293 = scmp.eq.s32.totalorder %s24, 1
    %p294 = scmp.ne.s32.totalorder %s289, %s291
    %p295 = scmp.eq.s32.totalorder %s24, 0
    %p296 = por %p294, %p295
    %p297 = scmp.ne.s32.totalorder %s289, %s291
    %p298 = scmp.eq.s32.totalorder %s29, 1
    %p299 = por %p297, %p298
    %p300 = scmp.ne.s32.totalorder %s291, %s292
    %p301 = scmp.eq.s32.totalorder %s29, 0
    %p302 = por %p300, %p301
    %p303 = scmp.ne.s32.totalorder %s291, %s292
    %p304 = scmp.eq.s32.totalorder %s30, 1
    %p305 = por %p303, %p304
    %p307 = scmp.ne.s32.totalorder %s292, %s306
    %p308 = scmp.eq.s32.totalorder %s30, 0
    %p309 = por %p307, %p308
    %s311 = sadd.s32 %s310, 1
    %p314 = scmp.eq.s32.totalorder %s24, 1
    %p315 = scmp.ne.s32.totalorder %s310, %s312
    %p316 = scmp.eq.s32.totalorder %s24, 0
    %p317 = por %p315, %p316
    %p318 = scmp.ne.s32.totalorder %s310, %s312
    %p319 = scmp.eq.s32.totalorder %s29, 1
    %p320 = por %p318, %p319
    %p321 = scmp.ne.s32.totalorder %s312, %s313
    %p322 = scmp.eq.s32.totalorder %s29, 0
    %p323 = por %p321, %p322
    %p324 = scmp.ne.s32.totalorder %s312, %s313
    %p325 = scmp.eq.s32.totalorder %s30, 1
    %p326 = por %p324, %p325
    %p328 = scmp.ne.s32.totalorder %s313, %s327
    %p329 = scmp.eq.s32.totalorder %s30, 0
    %p330 = por %p328, %p329
    %s332 = sadd.s32 %s331, 1
    %p335 = scmp.eq.s32.totalorder %s24, 1
    %p336 = scmp.ne.s32.totalorder %s331, %s333
    %p337 = scmp.eq.s32.totalorder %s24, 0
    %p338 = por %p336, %p337
    %p339 = scmp.ne.s32.totalorder %s331, %s333
    %p340 = scmp.eq.s32.totalorder %s29, 1
    %p341 = por %p339, %p340
    %p342 = scmp.ne.s32.totalorder %s333, %s334
    %p343 = scmp.eq.s32.totalorder %s29, 0
    %p344 = por %p342, %p343
    %p345 = scmp.ne.s32.totalorder %s333, %s334
    %p346 = scmp.eq.s32.totalorder %s30, 1
    %p347 = por %p345, %p346
    %p349 = scmp.ne.s32.totalorder %s334, %s348
    %p350 = scmp.eq.s32.totalorder %s30, 0
    %p351 = por %p349, %p350
    %s353 = sadd.s32 %s352, 1
    %p356 = scmp.eq.s32.totalorder %s24, 1
    %p357 = scmp.ne.s32.totalorder %s352, %s354
    %p358 = scmp.eq.s32.totalorder %s24, 0
    %p359 = por %p357, %p358
    %p360 = scmp.ne.s32.totalorder %s352, %s354
    %p361 = scmp.eq.s32.totalorder %s29, 1
    %p362 = por %p360, %p361
    %p363 = scmp.ne.s32.totalorder %s354, %s355
    %p364 = scmp.eq.s32.totalorder %s29, 0
    %p365 = por %p363, %p364
    %p366 = scmp.ne.s32.totalorder %s354, %s355
    %p367 = scmp.eq.s32.totalorder %s30, 1
    %p368 = por %p366, %p367
    %p370 = scmp.ne.s32.totalorder %s355, %s369
    %p371 = scmp.eq.s32.totalorder %s30, 0
    %p372 = por %p370, %p371
    %s373 = ssub.s32 %s24, %s31
    %p374 = scmp.eq.s32.totalorder %s373, 0
    %s376 = sadd.s32 %s375, 1
    %s377 = scalar_select %p374, %s375, %s376
    %p380 = pneg %p374
    %p381 = scmp.eq.s32.totalorder %s24, 1
    %p382 = por %p380, %p381
    %p383 = scmp.ne.s32.totalorder %s375, %s378
    %p384 = scmp.eq.s32.totalorder %s24, 0
    %p385 = por %p383, %p384
    %p386 = scmp.ne.s32.totalorder %s375, %s378
    %p387 = scmp.eq.s32.totalorder %s29, 1
    %p388 = por %p386, %p387
    %p389 = scmp.ne.s32.totalorder %s378, %s379
    %p390 = scmp.eq.s32.totalorder %s29, 0
    %p391 = por %p389, %p390
    %p392 = scmp.ne.s32.totalorder %s378, %s379
    %p393 = scmp.eq.s32.totalorder %s30, 1
    %p394 = por %p392, %p393
    %p396 = scmp.ne.s32.totalorder %s379, %s395
    %p397 = scmp.eq.s32.totalorder %s30, 0
    %p398 = por %p396, %p397
    %p399 = scmp.le.s32.totalorder 1, %s24
    %p400 = scmp.lt.s32.totalorder %s24, 3
    %p401 = pnand %p399, %p400
    %p402 = pneg %p401
    // Predicated region
    $region9: #{forward.1} parent=5 // pred_check
      _
    $region10: #{forward.1} parent=5 // pred_check_branch
      %404 = sbr.rel (%p401) target = $region12
    $region11: #{forward.1} parent=5 // pred_region
      %s405 = ssub.s32 %s24, 1
      // Predicated region
      $region13: #{forward.1} parent=11 // pred_check
        %p406 = pneg %p71
      $region14: #{forward.1} parent=11 // pred_check_branch
        %408 = sbr.rel (%p406) target = $region16
      $region15: #{forward.1} parent=11 // pred_region
        _
      $region16: #{forward.1} parent=11 // pred_fallthru
        _
      // Predicated region
      $region17: #{forward.1} parent=11 // pred_check
        %p409 = pneg %p92
      $region18: #{forward.1} parent=11 // pred_check_branch
        %411 = sbr.rel (%p409) target = $region20
      $region19: #{forward.1} parent=11 // pred_region
        _
      $region20: #{forward.1} parent=11 // pred_fallthru
        _
      // Predicated region
      $region21: #{forward.1} parent=11 // pred_check
        %p412 = pneg %p113
      $region22: #{forward.1} parent=11 // pred_check_branch
        %414 = sbr.rel (%p412) target = $region24
      $region23: #{forward.1} parent=11 // pred_region
        _
      $region24: #{forward.1} parent=11 // pred_fallthru
        _
      // Predicated region
      $region25: #{forward.1} parent=11 // pred_check
        %p415 = pneg %p134
      $region26: #{forward.1} parent=11 // pred_check_branch
        %417 = sbr.rel (%p415) target = $region28
      $region27: #{forward.1} parent=11 // pred_region
        _
      $region28: #{forward.1} parent=11 // pred_fallthru
        _
      // Predicated region
      $region29: #{forward.1} parent=11 // pred_check
        %p418 = pneg %p155
      $region30: #{forward.1} parent=11 // pred_check_branch
        %420 = sbr.rel (%p418) target = $region32
      $region31: #{forward.1} parent=11 // pred_region
        _
      $region32: #{forward.1} parent=11 // pred_fallthru
        _
      // Predicated region
      $region33: #{forward.1} parent=11 // pred_check
        %p421 = pneg %p176
      $region34: #{forward.1} parent=11 // pred_check_branch
        %423 = sbr.rel (%p421) target = $region36
      $region35: #{forward.1} parent=11 // pred_region
        _
      $region36: #{forward.1} parent=11 // pred_fallthru
        _
      // Predicated region
      $region37: #{forward.1} parent=11 // pred_check
        %p424 = pneg %p197
      $region38: #{forward.1} parent=11 // pred_check_branch
        %426 = sbr.rel (%p424) target = $region40
      $region39: #{forward.1} parent=11 // pred_region
        _
      $region40: #{forward.1} parent=11 // pred_fallthru
        _
      // Predicated region
      $region41: #{forward.1} parent=11 // pred_check
        %p427 = pneg %p218
      $region42: #{forward.1} parent=11 // pred_check_branch
        %429 = sbr.rel (%p427) target = $region44
      $region43: #{forward.1} parent=11 // pred_region
        _
      $region44: #{forward.1} parent=11 // pred_fallthru
        _
      // Predicated region
      $region45: #{forward.1} parent=11 // pred_check
        %p430 = pneg %p239
      $region46: #{forward.1} parent=11 // pred_check_branch
        %432 = sbr.rel (%p430) target = $region48
      $region47: #{forward.1} parent=11 // pred_region
        _
      $region48: #{forward.1} parent=11 // pred_fallthru
        _
      // Predicated region
      $region49: #{forward.1} parent=11 // pred_check
        %p433 = pneg %p260
      $region50: #{forward.1} parent=11 // pred_check_branch
        %435 = sbr.rel (%p433) target = $region52
      $region51: #{forward.1} parent=11 // pred_region
        _
      $region52: #{forward.1} parent=11 // pred_fallthru
        _
      // Predicated region
      $region53: #{forward.1} parent=11 // pred_check
        %p436 = pneg %p281
      $region54: #{forward.1} parent=11 // pred_check_branch
        %438 = sbr.rel (%p436) target = $region56
      $region55: #{forward.1} parent=11 // pred_region
        _
      $region56: #{forward.1} parent=11 // pred_fallthru
        _
      // Predicated region
      $region57: #{forward.1} parent=11 // pred_check
        %p439 = pneg %p302
      $region58: #{forward.1} parent=11 // pred_check_branch
        %441 = sbr.rel (%p439) target = $region60
      $region59: #{forward.1} parent=11 // pred_region
        _
      $region60: #{forward.1} parent=11 // pred_fallthru
        _
      // Predicated region
      $region61: #{forward.1} parent=11 // pred_check
        %p442 = pneg %p323
      $region62: #{forward.1} parent=11 // pred_check_branch
        %444 = sbr.rel (%p442) target = $region64
      $region63: #{forward.1} parent=11 // pred_region
        _
      $region64: #{forward.1} parent=11 // pred_fallthru
        _
      // Predicated region
      $region65: #{forward.1} parent=11 // pred_check
        %p445 = pneg %p344
      $region66: #{forward.1} parent=11 // pred_check_branch
        %447 = sbr.rel (%p445) target = $region68
      $region67: #{forward.1} parent=11 // pred_region
        _
      $region68: #{forward.1} parent=11 // pred_fallthru
        _
      // Predicated region
      $region69: #{forward.1} parent=11 // pred_check
        %p448 = pneg %p365
      $region70: #{forward.1} parent=11 // pred_check_branch
        %450 = sbr.rel (%p448) target = $region72
      $region71: #{forward.1} parent=11 // pred_region
        _
      $region72: #{forward.1} parent=11 // pred_fallthru
        _
    $region12: #{forward.1} parent=5 // pred_fallthru
      _
    %p451 = scmp.lt.s32.totalorder %s24, 2
    // Predicated region
    $region73: #{forward.1} parent=5 // pred_check
      %p452 = pneg %p451
    $region74: #{forward.1} parent=5 // pred_check_branch
      %454 = sbr.rel (%p452) target = $region76
    $region75: #{forward.1} parent=5 // pred_region
      // Predicated region
      $region77: #{forward.1} parent=75 // pred_check
        %p455 = pneg %p44
      $region78: #{forward.1} parent=75 // pred_check_branch
        %457 = sbr.rel (%p455) target = $region80
      $region79: #{forward.1} parent=75 // pred_region
        %s458 = smul.u32 16, %s24
        %p459 = scmp.lt.s32.totalorder %s458, 31
        %s460 = scalar_select %p459, %s458, 31
        %s461 = smul.addr %s460, 8
        %s462 = scalar_lea.vmem %s0, %s461
        %s463 = smul.u32 16, %s24
      $region80: #{forward.1} parent=75 // pred_fallthru
        _
    $region76: #{forward.1} parent=5 // pred_fallthru
      _
    %p464 = scmp.le.s32.totalorder 1, %s24
    %p465 = scmp.lt.s32.totalorder %s24, 3
    %p466 = pnand %p464, %p465
    %p467 = pneg %p466
    // Predicated region
    $region81: #{forward.1} parent=5 // pred_check
      _
    $region82: #{forward.1} parent=5 // pred_check_branch
      %469 = sbr.rel (%p466) target = $region84
    $region83: #{forward.1} parent=5 // pred_region
      %s470 = ssub.s32 %s24, 1
      %s471 = smul.u32 16, %s29
      %p472 = scmp.lt.s32.totalorder %s471, 31
      %s473 = scalar_select %p472, %s471, 31
      %s474 = smul.addr %s473, 8
      %s475 = scalar_lea.vmem %s0, %s474
      %p476 = pneg %p50
      %p477 = pneg %p47
      %p478 = pneg %p71
      %p479 = pneg %p68
      %p480 = pneg %p92
      %p481 = pneg %p89
      %p482 = pneg %p113
      %p483 = pneg %p110
      %p484 = pneg %p134
      %p485 = pneg %p131
      %p486 = pneg %p155
      %p487 = pneg %p152
      %p488 = pneg %p176
      %p489 = pneg %p173
      %p490 = pneg %p197
      %p491 = pneg %p194
      %p492 = pneg %p218
      %p493 = pneg %p215
      %p494 = pneg %p239
      %p495 = pneg %p236
      %p496 = pneg %p260
      %p497 = pneg %p257
      %p498 = pneg %p281
      %p499 = pneg %p278
      %p500 = pneg %p302
      %p501 = pneg %p299
      %p502 = pneg %p323
      %p503 = pneg %p320
      %p504 = pneg %p344
      %p505 = pneg %p341
      %p506 = pneg %p365
      %p507 = pneg %p362
      %p508 = pneg %p391
      %p509 = pneg %p388
      %p510 = scmp.lt.s32.totalorder %s29, 1
      %s511 = scalar_select %p510, %s29, 1
      %s512 = smul.addr %s511, 8
      %s513 = scalar_lea.vmem %s16, %s512
      %s514 = smul.u32 16, %s29
      %p515 = scmp.lt.s32.totalorder %s514, 31
      %s516 = scalar_select %p515, %s514, 31
      %s517 = smul.addr %s516, 8
      %s518 = scalar_lea.vmem %s0, %s517
      %s519 = smul.u32 16, %s29
      %p520 = scmp.lt.s32.totalorder %s29, 1
      %s521 = scalar_select %p520, %s29, 1
      %s522 = smul.addr %s521, 8
      %s523 = scalar_lea.vmem %s16, %s522
      %v525 = vld [vmem:[%s518] sm:$0xff]
      %v526 = vld [vmem:[%s518 + $0x8] sm:$0xff]
      %v527 = vld [vmem:[%s518 + $0x10] sm:$0xff]
      %v528 = vld [vmem:[%s518 + $0x18] sm:$0xff]
      %v529 = vld [vmem:[%s518 + $0x20] sm:$0xff]
      %v530 = vld [vmem:[%s518 + $0x28] sm:$0xff]
      %v531 = vld [vmem:[%s518 + $0x30] sm:$0xff]
      %v532 = vld [vmem:[%s518 + $0x38] sm:$0xff]
      %v533 = vld [vmem:[%s518 + $0x40] sm:$0xff]
      %v534 = vld [vmem:[%s518 + $0x48] sm:$0xff]
      %v535 = vld [vmem:[%s518 + $0x50] sm:$0xff]
      %v536 = vld [vmem:[%s518 + $0x58] sm:$0xff]
      %v537 = vld [vmem:[%s518 + $0x60] sm:$0xff]
      %v538 = vld [vmem:[%s518 + $0x68] sm:$0xff]
      %v539 = vld [vmem:[%s518 + $0x70] sm:$0xff]
      %v540 = vld [vmem:[%s518 + $0x78] sm:$0xff]
      %v541 = vpack.c.bf16 %v526, %v525
      %v542 = vpack.c.bf16 %v528, %v527
      %v543 = vpack.c.bf16 %v530, %v529
      %v544 = vpack.c.bf16 %v532, %v531
      %v545 = vpack.c.bf16 %v534, %v533
      %v546 = vpack.c.bf16 %v536, %v535
      %v547 = vpack.c.bf16 %v538, %v537
      %v548 = vpack.c.bf16 %v540, %v539
      %v549 = vld [vmem:[%s1] sm:$0xf]
      %v550 = vld [vmem:[%s1 + $0x4] sm:$0xf]
      %v551 = vld [vmem:[%s1 + $0x8] sm:$0xf]
      %v552 = vld [vmem:[%s1 + $0xc] sm:$0xf]
      %v553 = vld [vmem:[%s1 + $0x10] sm:$0xf]
      %v554 = vld [vmem:[%s1 + $0x14] sm:$0xf]
      %v555 = vld [vmem:[%s1 + $0x18] sm:$0xf]
      %v556 = vld [vmem:[%s1 + $0x1c] sm:$0xf]
      %s557 = scalar_lea.vmem %s1, 32
      %v558 = vld [vmem:[%s557] sm:$0xf]
      %v559 = vld [vmem:[%s557 + $0x4] sm:$0xf]
      %v560 = vld [vmem:[%s557 + $0x8] sm:$0xf]
      %v561 = vld [vmem:[%s557 + $0xc] sm:$0xf]
      %v562 = vld [vmem:[%s557 + $0x10] sm:$0xf]
      %v563 = vld [vmem:[%s557 + $0x14] sm:$0xf]
      %v564 = vld [vmem:[%s557 + $0x18] sm:$0xf]
      %v565 = vld [vmem:[%s557 + $0x1c] sm:$0xf]
      %vm566 = vsmask.f32 7424
      %v568 = vshrl.u32 %v541, 16
      %v570 = vshll.u32 %v541, 16
      %v572 = vrot.slane %v570, 1
      %v573 = vor.u32 %v568, %v572
      %v575 = vshll.u32 %v542, 16
      %v577 = vrot.slane %v575, 1
      %v578 = vsel %vm566, %v573, %v577
      %v579 = vshrl.u32 %v542, 16
      %v581 = vor.u32 %v579, %v577
      %v583 = vshll.u32 %v543, 16
      %v585 = vrot.slane %v583, 1
      %v586 = vsel %vm566, %v581, %v585
      %v587 = vshrl.u32 %v543, 16
      %v589 = vor.u32 %v587, %v585
      %v591 = vshll.u32 %v544, 16
      %v593 = vrot.slane %v591, 1
      %v594 = vsel %vm566, %v589, %v593
      %v595 = vshrl.u32 %v544, 16
      %v597 = vor.u32 %v595, %v593
      %v599 = vshll.u32 %v545, 16
      %v601 = vrot.slane %v599, 1
      %v602 = vsel %vm566, %v597, %v601
      %v603 = vshrl.u32 %v545, 16
      %v605 = vor.u32 %v603, %v601
      %v607 = vshll.u32 %v546, 16
      %v609 = vrot.slane %v607, 1
      %v610 = vsel %vm566, %v605, %v609
      %v611 = vshrl.u32 %v546, 16
      %v613 = vor.u32 %v611, %v609
      %v615 = vshll.u32 %v547, 16
      %v617 = vrot.slane %v615, 1
      %v618 = vsel %vm566, %v613, %v617
      %v619 = vshrl.u32 %v547, 16
      %v621 = vor.u32 %v619, %v617
      %v623 = vshll.u32 %v548, 16
      %v625 = vrot.slane %v623, 1
      %v626 = vsel %vm566, %v621, %v625
      %v627 = vshrl.u32 %v548, 16
      %v629 = vor.u32 %v627, %v625
      %v638 = vunpack.c.l.b16 %v558
      %v639 = vunpack.c.l.b16 %v559
      %v640 = vunpack.c.l.b16 %v560
      %v641 = vunpack.c.l.b16 %v561
      %v642 = vunpack.c.l.b16 %v562
      %v643 = vunpack.c.l.b16 %v563
      %v644 = vunpack.c.l.b16 %v564
      %v645 = vunpack.c.l.b16 %v565
      %v646 = vpack.c.b16 %v639, %v638
      %v647 = vpack.c.b16 %v641, %v640
      %v648 = vpack.c.b16 %v643, %v642
      %v649 = vpack.c.b16 %v645, %v644
      %vm654 = vcmask 523264
      %v656 = vsel %vm654, %v578, 0
      %v659 = vsel %vm654, %v586, 0
      %v662 = vsel %vm654, %v594, 0
      %v665 = vsel %vm654, %v602, 0
      %v668 = vsel %vm654, %v610, 0
      %v671 = vsel %vm654, %v618, 0
      %v674 = vsel %vm654, %v626, 0
      %v677 = vsel %vm654, %v629, 0
      %679 = vmatprep.subr.bf16.mxu0 0
      %680 = vmatpush1.bf16.msra.mxu0 0
      %681 = vmatprep.subr.bf16.mxu0 0
      %682 = vmatpush1.bf16.msra.mxu0 0
      %683 = vmatprep.subr.bf16.mxu0 0
      %684 = vmatpush1.bf16.msra.mxu0 0
      %685 = vmatprep.subr.bf16.mxu0 0
      %686 = vmatpush1.bf16.msra.mxu0 0
      %687 = vmatprep.subr.bf16.mxu0 0
      %688 = vmatpush1.bf16.msra.mxu0 %v649
      %689 = vmatprep.subr.bf16.mxu0 0
      %690 = vmatpush1.bf16.msra.mxu0 %v648
      %691 = vmatprep.subr.bf16.mxu0 0
      %692 = vmatpush1.bf16.msra.mxu0 %v647
      %693 = vmatprep.subr.bf16.mxu0 0
      %694 = vmatpush1.bf16.msra.mxu0 %v646
      %695 = vmatprep.subr.bf16.mxu0 0
      %696 = vmatpush2.bf16.msra.mxu0 0
      %697 = vmatprep.subr.bf16.mxu0 0
      %698 = vmatpush2.bf16.msra.mxu0 0
      %699 = vmatprep.subr.bf16.mxu0 0
      %700 = vmatpush2.bf16.msra.mxu0 0
      %701 = vmatprep.subr.bf16.mxu0 0
      %702 = vmatpush2.bf16.msra.mxu0 0
      %703 = vmatprep.subr.bf16.mxu0 0
      %704 = vmatpush2.bf16.msra.mxu0 0
      %705 = vmatprep.subr.bf16.mxu0 0
      %706 = vmatpush2.bf16.msra.mxu0 0
      %707 = vmatprep.subr.bf16.mxu0 0
      %708 = vmatpush2.bf16.msra.mxu0 0
      %709 = vmatprep.subr.bf16.mxu0 0
      %710 = vmatpush2.bf16.msra.mxu0 0
      %711 = vmatprep.mubr.bf16.mxu0 0
      %712 = vmatmul.mubr.bf16.gmra.mxu0 %v656
      %v713 = vpop.f32.mrf.mxu0
      %v714 = vadd.f32 0.0, %v713
      %v715 = vpop.f32.mrf.mxu0
      %v716 = vpop.f32.mrf.mxu0
      %v717 = vadd.f32 0.0, %v716
      %v718 = vpop.f32.mrf.mxu0
      %719 = vmatprep.mubr.bf16.mxu0 0
      %720 = vmatmul.mubr.bf16.gmra.mxu0 %v659
      %v721 = vpop.f32.mrf.mxu0
      %v722 = vadd.f32 0.0, %v721
      %v723 = vpop.f32.mrf.mxu0
      %v724 = vpop.f32.mrf.mxu0
      %v725 = vadd.f32 0.0, %v724
      %v726 = vpop.f32.mrf.mxu0
      %727 = vmatprep.mubr.bf16.mxu0 0
      %728 = vmatmul.mubr.bf16.gmra.mxu0 %v662
      %v729 = vpop.f32.mrf.mxu0
      %v730 = vadd.f32 0.0, %v729
      %v731 = vpop.f32.mrf.mxu0
      %v732 = vpop.f32.mrf.mxu0
      %v733 = vadd.f32 0.0, %v732
      %v734 = vpop.f32.mrf.mxu0
      %735 = vmatprep.mubr.bf16.mxu0 0
      %736 = vmatmul.mubr.bf16.gmra.mxu0 %v665
      %v737 = vpop.f32.mrf.mxu0
      %v738 = vadd.f32 0.0, %v737
      %v739 = vpop.f32.mrf.mxu0
      %v740 = vpop.f32.mrf.mxu0
      %v741 = vadd.f32 0.0, %v740
      %v742 = vpop.f32.mrf.mxu0
      %743 = vmatprep.mubr.bf16.mxu0 0
      %744 = vmatmul.mubr.bf16.gmra.mxu0 %v668
      %v745 = vpop.f32.mrf.mxu0
      %v746 = vadd.f32 0.0, %v745
      %v747 = vpop.f32.mrf.mxu0
      %v748 = vpop.f32.mrf.mxu0
      %v749 = vadd.f32 0.0, %v748
      %v750 = vpop.f32.mrf.mxu0
      %751 = vmatprep.mubr.bf16.mxu0 0
      %752 = vmatmul.mubr.bf16.gmra.mxu0 %v671
      %v753 = vpop.f32.mrf.mxu0
      %v754 = vadd.f32 0.0, %v753
      %v755 = vpop.f32.mrf.mxu0
      %v756 = vpop.f32.mrf.mxu0
      %v757 = vadd.f32 0.0, %v756
      %v758 = vpop.f32.mrf.mxu0
      %759 = vmatprep.mubr.bf16.mxu0 0
      %760 = vmatmul.mubr.bf16.gmra.mxu0 %v674
      %v761 = vpop.f32.mrf.mxu0
      %v762 = vadd.f32 0.0, %v761
      %v763 = vpop.f32.mrf.mxu0
      %v764 = vpop.f32.mrf.mxu0
      %v765 = vadd.f32 0.0, %v764
      %v766 = vpop.f32.mrf.mxu0
      %767 = vmatprep.mubr.bf16.mxu0 0
      %768 = vmatmul.mubr.bf16.gmra.mxu0 %v677
      %v769 = vpop.f32.mrf.mxu0
      %v770 = vadd.f32 0.0, %v769
      %v771 = vpop.f32.mrf.mxu0
      %v772 = vpop.f32.mrf.mxu0
      %v773 = vadd.f32 0.0, %v772
      %v774 = vpop.f32.mrf.mxu0
      %775 = vdwg.mxu0
      %v784 = vunpack.c.l.b16 %v549
      %v785 = vunpack.c.l.b16 %v550
      %v786 = vunpack.c.l.b16 %v551
      %v787 = vunpack.c.l.b16 %v552
      %v788 = vunpack.c.l.b16 %v553
      %v789 = vunpack.c.l.b16 %v554
      %v790 = vunpack.c.l.b16 %v555
      %v791 = vunpack.c.l.b16 %v556
      %v792 = vpack.c.b16 %v785, %v784
      %v793 = vpack.c.b16 %v787, %v786
      %v794 = vpack.c.b16 %v789, %v788
      %v795 = vpack.c.b16 %v791, %v790
      %v800 = vsel %vm654, %v541, 0
      %v802 = vsel %vm654, %v542, 0
      %v804 = vsel %vm654, %v543, 0
      %v806 = vsel %vm654, %v544, 0
      %v808 = vsel %vm654, %v545, 0
      %v810 = vsel %vm654, %v546, 0
      %v812 = vsel %vm654, %v547, 0
      %v814 = vsel %vm654, %v548, 0
      %816 = vmatprep.subr.bf16.mxu0 0
      %817 = vmatpush1.bf16.msra.mxu0 0
      %818 = vmatprep.subr.bf16.mxu0 0
      %819 = vmatpush1.bf16.msra.mxu0 0
      %820 = vmatprep.subr.bf16.mxu0 0
      %821 = vmatpush1.bf16.msra.mxu0 0
      %822 = vmatprep.subr.bf16.mxu0 0
      %823 = vmatpush1.bf16.msra.mxu0 0
      %824 = vmatprep.subr.bf16.mxu0 0
      %825 = vmatpush1.bf16.msra.mxu0 %v795
      %826 = vmatprep.subr.bf16.mxu0 0
      %827 = vmatpush1.bf16.msra.mxu0 %v794
      %828 = vmatprep.subr.bf16.mxu0 0
      %829 = vmatpush1.bf16.msra.mxu0 %v793
      %830 = vmatprep.subr.bf16.mxu0 0
      %831 = vmatpush1.bf16.msra.mxu0 %v792
      %832 = vmatprep.subr.bf16.mxu0 0
      %833 = vmatpush2.bf16.msra.mxu0 0
      %834 = vmatprep.subr.bf16.mxu0 0
      %835 = vmatpush2.bf16.msra.mxu0 0
      %836 = vmatprep.subr.bf16.mxu0 0
      %837 = vmatpush2.bf16.msra.mxu0 0
      %838 = vmatprep.subr.bf16.mxu0 0
      %839 = vmatpush2.bf16.msra.mxu0 0
      %840 = vmatprep.subr.bf16.mxu0 0
      %841 = vmatpush2.bf16.msra.mxu0 0
      %842 = vmatprep.subr.bf16.mxu0 0
      %843 = vmatpush2.bf16.msra.mxu0 0
      %844 = vmatprep.subr.bf16.mxu0 0
      %845 = vmatpush2.bf16.msra.mxu0 0
      %846 = vmatprep.subr.bf16.mxu0 0
      %847 = vmatpush2.bf16.msra.mxu0 0
      %848 = vmatprep.mubr.bf16.mxu0 0
      %849 = vmatmul.mubr.bf16.gmra.mxu0 %v800
      %v850 = vpop.f32.mrf.mxu0
      %v851 = vadd.f32 %v714, %v850
      %v852 = vpop.f32.mrf.mxu0
      %v853 = vpop.f32.mrf.mxu0
      %v854 = vadd.f32 %v717, %v853
      %v855 = vpop.f32.mrf.mxu0
      %856 = vmatprep.mubr.bf16.mxu0 0
      %857 = vmatmul.mubr.bf16.gmra.mxu0 %v802
      %v858 = vpop.f32.mrf.mxu0
      %v859 = vadd.f32 %v722, %v858
      %v860 = vpop.f32.mrf.mxu0
      %v861 = vpop.f32.mrf.mxu0
      %v862 = vadd.f32 %v725, %v861
      %v863 = vpop.f32.mrf.mxu0
      %864 = vmatprep.mubr.bf16.mxu0 0
      %865 = vmatmul.mubr.bf16.gmra.mxu0 %v804
      %v866 = vpop.f32.mrf.mxu0
      %v867 = vadd.f32 %v730, %v866
      %v868 = vpop.f32.mrf.mxu0
      %v869 = vpop.f32.mrf.mxu0
      %v870 = vadd.f32 %v733, %v869
      %v871 = vpop.f32.mrf.mxu0
      %872 = vmatprep.mubr.bf16.mxu0 0
      %873 = vmatmul.mubr.bf16.gmra.mxu0 %v806
      %v874 = vpop.f32.mrf.mxu0
      %v875 = vadd.f32 %v738, %v874
      %v876 = vpop.f32.mrf.mxu0
      %v877 = vpop.f32.mrf.mxu0
      %v878 = vadd.f32 %v741, %v877
      %v879 = vpop.f32.mrf.mxu0
      %880 = vmatprep.mubr.bf16.mxu0 0
      %881 = vmatmul.mubr.bf16.gmra.mxu0 %v808
      %v882 = vpop.f32.mrf.mxu0
      %v883 = vadd.f32 %v746, %v882
      %v884 = vpop.f32.mrf.mxu0
      %v885 = vpop.f32.mrf.mxu0
      %v886 = vadd.f32 %v749, %v885
      %v887 = vpop.f32.mrf.mxu0
      %888 = vmatprep.mubr.bf16.mxu0 0
      %889 = vmatmul.mubr.bf16.gmra.mxu0 %v810
      %v890 = vpop.f32.mrf.mxu0
      %v891 = vadd.f32 %v754, %v890
      %v892 = vpop.f32.mrf.mxu0
      %v893 = vpop.f32.mrf.mxu0
      %v894 = vadd.f32 %v757, %v893
      %v895 = vpop.f32.mrf.mxu0
      %896 = vmatprep.mubr.bf16.mxu0 0
      %897 = vmatmul.mubr.bf16.gmra.mxu0 %v812
      %v898 = vpop.f32.mrf.mxu0
      %v899 = vadd.f32 %v762, %v898
      %v900 = vpop.f32.mrf.mxu0
      %v901 = vpop.f32.mrf.mxu0
      %v902 = vadd.f32 %v765, %v901
      %v903 = vpop.f32.mrf.mxu0
      %904 = vmatprep.mubr.bf16.mxu0 0
      %905 = vmatmul.mubr.bf16.gmra.mxu0 %v814
      %v906 = vpop.f32.mrf.mxu0
      %v907 = vadd.f32 %v770, %v906
      %v908 = vpop.f32.mrf.mxu0
      %v909 = vpop.f32.mrf.mxu0
      %v910 = vadd.f32 %v773, %v909
      %v911 = vpop.f32.mrf.mxu0
      %912 = vdwg.mxu0
      %s913 = scalar_lea.vmem %s1, 64
      %v914 = vld [vmem:[%s913] sm:$0xf]
      %v915 = vld [vmem:[%s913 + $0x4] sm:$0xf]
      %v916 = vld [vmem:[%s913 + $0x8] sm:$0xf]
      %v917 = vld [vmem:[%s913 + $0xc] sm:$0xf]
      %v918 = vld [vmem:[%s913 + $0x10] sm:$0xf]
      %v919 = vld [vmem:[%s913 + $0x14] sm:$0xf]
      %v920 = vld [vmem:[%s913 + $0x18] sm:$0xf]
      %v921 = vld [vmem:[%s913 + $0x1c] sm:$0xf]
      %vm930 = vcmask 1046528
      %v931 = vrot.slane %v541, 1
      %v932 = vrot.slane %v542, 1
      %v933 = vsel %vm930, %v931, %v932
      %v934 = vrot.slane %v543, 1
      %v935 = vsel %vm930, %v932, %v934
      %v936 = vrot.slane %v544, 1
      %v937 = vsel %vm930, %v934, %v936
      %v938 = vrot.slane %v545, 1
      %v939 = vsel %vm930, %v936, %v938
      %v940 = vrot.slane %v546, 1
      %v941 = vsel %vm930, %v938, %v940
      %v942 = vrot.slane %v547, 1
      %v943 = vsel %vm930, %v940, %v942
      %v944 = vrot.slane %v548, 1
      %v945 = vsel %vm930, %v942, %v944
      %v954 = vunpack.c.l.b16 %v914
      %v955 = vunpack.c.l.b16 %v915
      %v956 = vunpack.c.l.b16 %v916
      %v957 = vunpack.c.l.b16 %v917
      %v958 = vunpack.c.l.b16 %v918
      %v959 = vunpack.c.l.b16 %v919
      %v960 = vunpack.c.l.b16 %v920
      %v961 = vunpack.c.l.b16 %v921
      %v962 = vpack.c.b16 %v955, %v954
      %v963 = vpack.c.b16 %v957, %v956
      %v964 = vpack.c.b16 %v959, %v958
      %v965 = vpack.c.b16 %v961, %v960
      %v971 = vsel %vm654, %v933, 0
      %v974 = vsel %vm654, %v935, 0
      %v977 = vsel %vm654, %v937, 0
      %v980 = vsel %vm654, %v939, 0
      %v983 = vsel %vm654, %v941, 0
      %v986 = vsel %vm654, %v943, 0
      %v989 = vsel %vm654, %v945, 0
      %v992 = vsel %vm654, %v944, 0
      %994 = vmatprep.subr.bf16.mxu0 0
      %995 = vmatpush1.bf16.msra.mxu0 0
      %996 = vmatprep.subr.bf16.mxu0 0
      %997 = vmatpush1.bf16.msra.mxu0 0
      %998 = vmatprep.subr.bf16.mxu0 0
      %999 = vmatpush1.bf16.msra.mxu0 0
      %1000 = vmatprep.subr.bf16.mxu0 0
      %1001 = vmatpush1.bf16.msra.mxu0 0
      %1002 = vmatprep.subr.bf16.mxu0 0
      %1003 = vmatpush1.bf16.msra.mxu0 %v965
      %1004 = vmatprep.subr.bf16.mxu0 0
      %1005 = vmatpush1.bf16.msra.mxu0 %v964
      %1006 = vmatprep.subr.bf16.mxu0 0
      %1007 = vmatpush1.bf16.msra.mxu0 %v963
      %1008 = vmatprep.subr.bf16.mxu0 0
      %1009 = vmatpush1.bf16.msra.mxu0 %v962
      %1010 = vmatprep.subr.bf16.mxu0 0
      %1011 = vmatpush2.bf16.msra.mxu0 0
      %1012 = vmatprep.subr.bf16.mxu0 0
      %1013 = vmatpush2.bf16.msra.mxu0 0
      %1014 = vmatprep.subr.bf16.mxu0 0
      %1015 = vmatpush2.bf16.msra.mxu0 0
      %1016 = vmatprep.subr.bf16.mxu0 0
      %1017 = vmatpush2.bf16.msra.mxu0 0
      %1018 = vmatprep.subr.bf16.mxu0 0
      %1019 = vmatpush2.bf16.msra.mxu0 0
      %1020 = vmatprep.subr.bf16.mxu0 0
      %1021 = vmatpush2.bf16.msra.mxu0 0
      %1022 = vmatprep.subr.bf16.mxu0 0
      %1023 = vmatpush2.bf16.msra.mxu0 0
      %1024 = vmatprep.subr.bf16.mxu0 0
      %1025 = vmatpush2.bf16.msra.mxu0 0
      %1026 = vmatprep.mubr.bf16.mxu0 0
      %1027 = vmatmul.mubr.bf16.gmra.mxu0 %v971
      %v1028 = vpop.f32.mrf.mxu0
      %v1029 = vadd.f32 0.0, %v1028
      %v1030 = vpop.f32.mrf.mxu0
      %v1031 = vpop.f32.mrf.mxu0
      %v1032 = vadd.f32 0.0, %v1031
      %v1033 = vpop.f32.mrf.mxu0
      %1034 = vmatprep.mubr.bf16.mxu0 0
      %1035 = vmatmul.mubr.bf16.gmra.mxu0 %v974
      %v1036 = vpop.f32.mrf.mxu0
      %v1037 = vadd.f32 0.0, %v1036
      %v1038 = vpop.f32.mrf.mxu0
      %v1039 = vpop.f32.mrf.mxu0
      %v1040 = vadd.f32 0.0, %v1039
      %v1041 = vpop.f32.mrf.mxu0
      %1042 = vmatprep.mubr.bf16.mxu0 0
      %1043 = vmatmul.mubr.bf16.gmra.mxu0 %v977
      %v1044 = vpop.f32.mrf.mxu0
      %v1045 = vadd.f32 0.0, %v1044
      %v1046 = vpop.f32.mrf.mxu0
      %v1047 = vpop.f32.mrf.mxu0
      %v1048 = vadd.f32 0.0, %v1047
      %v1049 = vpop.f32.mrf.mxu0
      %1050 = vmatprep.mubr.bf16.mxu0 0
      %1051 = vmatmul.mubr.bf16.gmra.mxu0 %v980
      %v1052 = vpop.f32.mrf.mxu0
      %v1053 = vadd.f32 0.0, %v1052
      %v1054 = vpop.f32.mrf.mxu0
      %v1055 = vpop.f32.mrf.mxu0
      %v1056 = vadd.f32 0.0, %v1055
      %v1057 = vpop.f32.mrf.mxu0
      %1058 = vmatprep.mubr.bf16.mxu0 0
      %1059 = vmatmul.mubr.bf16.gmra.mxu0 %v983
      %v1060 = vpop.f32.mrf.mxu0
      %v1061 = vadd.f32 0.0, %v1060
      %v1062 = vpop.f32.mrf.mxu0
      %v1063 = vpop.f32.mrf.mxu0
      %v1064 = vadd.f32 0.0, %v1063
      %v1065 = vpop.f32.mrf.mxu0
      %1066 = vmatprep.mubr.bf16.mxu0 0
      %1067 = vmatmul.mubr.bf16.gmra.mxu0 %v986
      %v1068 = vpop.f32.mrf.mxu0
      %v1069 = vadd.f32 0.0, %v1068
      %v1070 = vpop.f32.mrf.mxu0
      %v1071 = vpop.f32.mrf.mxu0
      %v1072 = vadd.f32 0.0, %v1071
      %v1073 = vpop.f32.mrf.mxu0
      %1074 = vmatprep.mubr.bf16.mxu0 0
      %1075 = vmatmul.mubr.bf16.gmra.mxu0 %v989
      %v1076 = vpop.f32.mrf.mxu0
      %v1077 = vadd.f32 0.0, %v1076
      %v1078 = vpop.f32.mrf.mxu0
      %v1079 = vpop.f32.mrf.mxu0
      %v1080 = vadd.f32 0.0, %v1079
      %v1081 = vpop.f32.mrf.mxu0
      %1082 = vmatprep.mubr.bf16.mxu0 0
      %1083 = vmatmul.mubr.bf16.gmra.mxu0 %v992
      %v1084 = vpop.f32.mrf.mxu0
      %v1085 = vadd.f32 0.0, %v1084
      %v1086 = vpop.f32.mrf.mxu0
      %v1087 = vpop.f32.mrf.mxu0
      %v1088 = vadd.f32 0.0, %v1087
      %v1089 = vpop.f32.mrf.mxu0
      %1090 = vdwg.mxu0
      %v1091 = vadd.f32 %v851, %v1029
      %v1092 = vadd.f32 %v854, %v1032
      %v1093 = vadd.f32 %v859, %v1037
      %v1094 = vadd.f32 %v862, %v1040
      %v1095 = vadd.f32 %v867, %v1045
      %v1096 = vadd.f32 %v870, %v1048
      %v1097 = vadd.f32 %v875, %v1053
      %v1098 = vadd.f32 %v878, %v1056
      %v1099 = vadd.f32 %v883, %v1061
      %v1100 = vadd.f32 %v886, %v1064
      %v1101 = vadd.f32 %v891, %v1069
      %v1102 = vadd.f32 %v894, %v1072
      %v1103 = vadd.f32 %v899, %v1077
      %v1104 = vadd.f32 %v902, %v1080
      %v1105 = vadd.f32 %v907, %v1085
      %v1106 = vadd.f32 %v910, %v1088
      %v1107 = vld [vmem:[%s2] sm:$0x1]
      %v1109 = vlaneseq
      %v1110 = vshrl.u32 %v1109, 7
      %v1111 = vsub.s32 0, %v1110
      %v1112 = vrot.slane %v1107, %v1111
      %v1114 = vadd.f32 %v1091, %v1112
      %v1115 = vadd.f32 %v1092, %v1112
      %v1116 = vadd.f32 %v1093, %v1112
      %v1117 = vadd.f32 %v1094, %v1112
      %v1118 = vadd.f32 %v1095, %v1112
      %v1119 = vadd.f32 %v1096, %v1112
      %v1120 = vadd.f32 %v1097, %v1112
      %v1121 = vadd.f32 %v1098, %v1112
      %v1122 = vadd.f32 %v1099, %v1112
      %v1123 = vadd.f32 %v1100, %v1112
      %v1124 = vadd.f32 %v1101, %v1112
      %v1125 = vadd.f32 %v1102, %v1112
      %v1126 = vadd.f32 %v1103, %v1112
      %v1127 = vadd.f32 %v1104, %v1112
      %v1128 = vadd.f32 %v1105, %v1112
      %v1129 = vadd.f32 %v1106, %v1112
      %v1130 = vmax.f32 %v1114, 0.0
      %v1131 = vmax.f32 %v1115, 0.0
      %v1132 = vmax.f32 %v1116, 0.0
      %v1133 = vmax.f32 %v1117, 0.0
      %v1134 = vmax.f32 %v1118, 0.0
      %v1135 = vmax.f32 %v1119, 0.0
      %v1136 = vmax.f32 %v1120, 0.0
      %v1137 = vmax.f32 %v1121, 0.0
      %v1138 = vmax.f32 %v1122, 0.0
      %v1139 = vmax.f32 %v1123, 0.0
      %v1140 = vmax.f32 %v1124, 0.0
      %v1141 = vmax.f32 %v1125, 0.0
      %v1142 = vmax.f32 %v1126, 0.0
      %v1143 = vmax.f32 %v1127, 0.0
      %v1144 = vmax.f32 %v1128, 0.0
      %v1145 = vmax.f32 %v1129, 0.0
      %v1146 = vld [vmem:[%s3] sm:$0xff]
      %v1147 = vld [vmem:[%s3 + $0x8] sm:$0xff]
      %v1148 = vld [vmem:[%s3 + $0x10] sm:$0xff]
      %v1149 = vld [vmem:[%s3 + $0x18] sm:$0xff]
      %v1150 = vld [vmem:[%s3 + $0x20] sm:$0xff]
      %v1151 = vld [vmem:[%s3 + $0x28] sm:$0xff]
      %v1152 = vld [vmem:[%s3 + $0x30] sm:$0xff]
      %vm1153 = vcmask 1031168
      %v1155 = vsel %vm1153, %v1146, 0
      %v1158 = vsel %vm1153, %v1147, 0
      %v1161 = vsel %vm1153, %v1148, 0
      %v1164 = vsel %vm1153, %v1149, 0
      %v1167 = vsel %vm1153, %v1150, 0
      %v1170 = vsel %vm1153, %v1151, 0
      %v1173 = vsel %vm1153, %v1152, 0
      %vm1175 = vcmask 1045504
      %v1177 = vsel %vm1175, %v1145, 0
      %1179 = vmatprep.subr.mxu0 0.0
      %1180 = vmatpush1.msra.mxu0 %v1177
      %1181 = vmatprep.subr.mxu0 0.0
      %1182 = vmatpush1.msra.mxu0 %v1144
      %1183 = vmatprep.subr.mxu0 0.0
      %1184 = vmatpush1.msra.mxu0 %v1143
      %1185 = vmatprep.subr.mxu0 0.0
      %1186 = vmatpush1.msra.mxu0 %v1142
      %1187 = vmatprep.subr.mxu0 0.0
      %1188 = vmatpush1.msra.mxu0 %v1141
      %1189 = vmatprep.subr.mxu0 0.0
      %1190 = vmatpush1.msra.mxu0 %v1140
      %1191 = vmatprep.subr.mxu0 0.0
      %1192 = vmatpush1.msra.mxu0 %v1139
      %1193 = vmatprep.subr.mxu0 0.0
      %1194 = vmatpush1.msra.mxu0 %v1138
      %1195 = vmatprep.subr.mxu0 0.0
      %1196 = vmatpush1.msra.mxu0 %v1137
      %1197 = vmatprep.subr.mxu0 0.0
      %1198 = vmatpush1.msra.mxu0 %v1136
      %1199 = vmatprep.subr.mxu0 0.0
      %1200 = vmatpush1.msra.mxu0 %v1135
      %1201 = vmatprep.subr.mxu0 0.0
      %1202 = vmatpush1.msra.mxu0 %v1134
      %1203 = vmatprep.subr.mxu0 0.0
      %1204 = vmatpush1.msra.mxu0 %v1133
      %1205 = vmatprep.subr.mxu0 0.0
      %1206 = vmatpush1.msra.mxu0 %v1132
      %1207 = vmatprep.subr.mxu0 0.0
      %1208 = vmatpush1.msra.mxu0 %v1131
      %1209 = vmatprep.subr.mxu0 0.0
      %1210 = vmatpush1.msra.mxu0 %v1130
      %1211 = vmatprep.subr.mxu0 0.0
      %1212 = vmatpush2.msra.mxu0 0.0
      %1213 = vmatprep.subr.mxu0 0.0
      %1214 = vmatpush2.msra.mxu0 0.0
      %1215 = vmatprep.subr.mxu0 0.0
      %1216 = vmatpush2.msra.mxu0 0.0
      %1217 = vmatprep.subr.mxu0 0.0
      %1218 = vmatpush2.msra.mxu0 0.0
      %1219 = vmatprep.subr.mxu0 0.0
      %1220 = vmatpush2.msra.mxu0 0.0
      %1221 = vmatprep.subr.mxu0 0.0
      %1222 = vmatpush2.msra.mxu0 0.0
      %1223 = vmatprep.subr.mxu0 0.0
      %1224 = vmatpush2.msra.mxu0 0.0
      %1225 = vmatprep.subr.mxu0 0.0
      %1226 = vmatpush2.msra.mxu0 0.0
      %1227 = vmatprep.subr.mxu0 0.0
      %1228 = vmatpush2.msra.mxu0 0.0
      %1229 = vmatprep.subr.mxu0 0.0
      %1230 = vmatpush2.msra.mxu0 0.0
      %1231 = vmatprep.subr.mxu0 0.0
      %1232 = vmatpush2.msra.mxu0 0.0
      %1233 = vmatprep.subr.mxu0 0.0
      %1234 = vmatpush2.msra.mxu0 0.0
      %1235 = vmatprep.subr.mxu0 0.0
      %1236 = vmatpush2.msra.mxu0 0.0
      %1237 = vmatprep.subr.mxu0 0.0
      %1238 = vmatpush2.msra.mxu0 0.0
      %1239 = vmatprep.subr.mxu0 0.0
      %1240 = vmatpush2.msra.mxu0 0.0
      %1241 = vmatprep.subr.mxu0 0.0
      %1242 = vmatpush2.msra.mxu0 0.0
      %1243 = vmatprep.mubr.f32.mxu0 0.0
      %1244 = vmatmul.mubr.f32.gmra.mxu0 %v1155
      %v1245 = vpop.f32.mrf.mxu0
      %v1246 = vadd.f32 0.0, %v1245
      %v1247 = vpop.f32.mrf.mxu0
      %1248 = vmatprep.mubr.f32.mxu0 0.0
      %1249 = vmatmul.mubr.f32.gmra.mxu0 %v1158
      %v1250 = vpop.f32.mrf.mxu0
      %v1251 = vadd.f32 0.0, %v1250
      %v1252 = vpop.f32.mrf.mxu0
      %1253 = vmatprep.mubr.f32.mxu0 0.0
      %1254 = vmatmul.mubr.f32.gmra.mxu0 %v1161
      %v1255 = vpop.f32.mrf.mxu0
      %v1256 = vadd.f32 0.0, %v1255
      %v1257 = vpop.f32.mrf.mxu0
      %1258 = vmatprep.mubr.f32.mxu0 0.0
      %1259 = vmatmul.mubr.f32.gmra.mxu0 %v1164
      %v1260 = vpop.f32.mrf.mxu0
      %v1261 = vadd.f32 0.0, %v1260
      %v1262 = vpop.f32.mrf.mxu0
      %1263 = vmatprep.mubr.f32.mxu0 0.0
      %1264 = vmatmul.mubr.f32.gmra.mxu0 %v1167
      %v1265 = vpop.f32.mrf.mxu0
      %v1266 = vadd.f32 0.0, %v1265
      %v1267 = vpop.f32.mrf.mxu0
      %1268 = vmatprep.mubr.f32.mxu0 0.0
      %1269 = vmatmul.mubr.f32.gmra.mxu0 %v1170
      %v1270 = vpop.f32.mrf.mxu0
      %v1271 = vadd.f32 0.0, %v1270
      %v1272 = vpop.f32.mrf.mxu0
      %1273 = vmatprep.mubr.f32.mxu0 0.0
      %1274 = vmatmul.mubr.f32.gmra.mxu0 %v1173
      %v1275 = vpop.f32.mrf.mxu0
      %v1276 = vadd.f32 0.0, %v1275
      %v1277 = vpop.f32.mrf.mxu0
      %1278 = vdwg.mxu0
      %v1279 = vld [vmem:[%s4] sm:$0xff]
      %v1280 = vld [vmem:[%s4 + $0x8] sm:$0xff]
      %v1281 = vld [vmem:[%s4 + $0x10] sm:$0xff]
      %v1282 = vld [vmem:[%s4 + $0x18] sm:$0xff]
      %v1283 = vld [vmem:[%s4 + $0x20] sm:$0xff]
      %v1284 = vld [vmem:[%s4 + $0x28] sm:$0xff]
      %v1285 = vld [vmem:[%s4 + $0x30] sm:$0xff]
      %v1287 = vsel %vm1153, %v1279, 0
      %v1290 = vsel %vm1153, %v1280, 0
      %v1293 = vsel %vm1153, %v1281, 0
      %v1296 = vsel %vm1153, %v1282, 0
      %v1299 = vsel %vm1153, %v1283, 0
      %v1302 = vsel %vm1153, %v1284, 0
      %v1305 = vsel %vm1153, %v1285, 0
      %1307 = vmatprep.subr.mxu0 0.0
      %1308 = vmatpush1.msra.mxu0 %v1177
      %1309 = vmatprep.subr.mxu0 0.0
      %1310 = vmatpush1.msra.mxu0 %v1144
      %1311 = vmatprep.subr.mxu0 0.0
      %1312 = vmatpush1.msra.mxu0 %v1143
      %1313 = vmatprep.subr.mxu0 0.0
      %1314 = vmatpush1.msra.mxu0 %v1142
      %1315 = vmatprep.subr.mxu0 0.0
      %1316 = vmatpush1.msra.mxu0 %v1141
      %1317 = vmatprep.subr.mxu0 0.0
      %1318 = vmatpush1.msra.mxu0 %v1140
      %1319 = vmatprep.subr.mxu0 0.0
      %1320 = vmatpush1.msra.mxu0 %v1139
      %1321 = vmatprep.subr.mxu0 0.0
      %1322 = vmatpush1.msra.mxu0 %v1138
      %1323 = vmatprep.subr.mxu0 0.0
      %1324 = vmatpush1.msra.mxu0 %v1137
      %1325 = vmatprep.subr.mxu0 0.0
      %1326 = vmatpush1.msra.mxu0 %v1136
      %1327 = vmatprep.subr.mxu0 0.0
      %1328 = vmatpush1.msra.mxu0 %v1135
      %1329 = vmatprep.subr.mxu0 0.0
      %1330 = vmatpush1.msra.mxu0 %v1134
      %1331 = vmatprep.subr.mxu0 0.0
      %1332 = vmatpush1.msra.mxu0 %v1133
      %1333 = vmatprep.subr.mxu0 0.0
      %1334 = vmatpush1.msra.mxu0 %v1132
      %1335 = vmatprep.subr.mxu0 0.0
      %1336 = vmatpush1.msra.mxu0 %v1131
      %1337 = vmatprep.subr.mxu0 0.0
      %1338 = vmatpush1.msra.mxu0 %v1130
      %1339 = vmatprep.subr.mxu0 0.0
      %1340 = vmatpush2.msra.mxu0 0.0
      %1341 = vmatprep.subr.mxu0 0.0
      %1342 = vmatpush2.msra.mxu0 0.0
      %1343 = vmatprep.subr.mxu0 0.0
      %1344 = vmatpush2.msra.mxu0 0.0
      %1345 = vmatprep.subr.mxu0 0.0
      %1346 = vmatpush2.msra.mxu0 0.0
      %1347 = vmatprep.subr.mxu0 0.0
      %1348 = vmatpush2.msra.mxu0 0.0
      %1349 = vmatprep.subr.mxu0 0.0
      %1350 = vmatpush2.msra.mxu0 0.0
      %1351 = vmatprep.subr.mxu0 0.0
      %1352 = vmatpush2.msra.mxu0 0.0
      %1353 = vmatprep.subr.mxu0 0.0
      %1354 = vmatpush2.msra.mxu0 0.0
      %1355 = vmatprep.subr.mxu0 0.0
      %1356 = vmatpush2.msra.mxu0 0.0
      %1357 = vmatprep.subr.mxu0 0.0
      %1358 = vmatpush2.msra.mxu0 0.0
      %1359 = vmatprep.subr.mxu0 0.0
      %1360 = vmatpush2.msra.mxu0 0.0
      %1361 = vmatprep.subr.mxu0 0.0
      %1362 = vmatpush2.msra.mxu0 0.0
      %1363 = vmatprep.subr.mxu0 0.0
      %1364 = vmatpush2.msra.mxu0 0.0
      %1365 = vmatprep.subr.mxu0 0.0
      %1366 = vmatpush2.msra.mxu0 0.0
      %1367 = vmatprep.subr.mxu0 0.0
      %1368 = vmatpush2.msra.mxu0 0.0
      %1369 = vmatprep.subr.mxu0 0.0
      %1370 = vmatpush2.msra.mxu0 0.0
      %1371 = vmatprep.mubr.f32.mxu0 0.0
      %1372 = vmatmul.mubr.f32.gmra.mxu0 %v1287
      %v1373 = vpop.f32.mrf.mxu0
      %v1374 = vadd.f32 0.0, %v1373
      %v1375 = vpop.f32.mrf.mxu0
      %1376 = vmatprep.mubr.f32.mxu0 0.0
      %1377 = vmatmul.mubr.f32.gmra.mxu0 %v1290
      %v1378 = vpop.f32.mrf.mxu0
      %v1379 = vadd.f32 0.0, %v1378
      %v1380 = vpop.f32.mrf.mxu0
      %1381 = vmatprep.mubr.f32.mxu0 0.0
      %1382 = vmatmul.mubr.f32.gmra.mxu0 %v1293
      %v1383 = vpop.f32.mrf.mxu0
      %v1384 = vadd.f32 0.0, %v1383
      %v1385 = vpop.f32.mrf.mxu0
      %1386 = vmatprep.mubr.f32.mxu0 0.0
      %1387 = vmatmul.mubr.f32.gmra.mxu0 %v1296
      %v1388 = vpop.f32.mrf.mxu0
      %v1389 = vadd.f32 0.0, %v1388
      %v1390 = vpop.f32.mrf.mxu0
      %1391 = vmatprep.mubr.f32.mxu0 0.0
      %1392 = vmatmul.mubr.f32.gmra.mxu0 %v1299
      %v1393 = vpop.f32.mrf.mxu0
      %v1394 = vadd.f32 0.0, %v1393
      %v1395 = vpop.f32.mrf.mxu0
      %1396 = vmatprep.mubr.f32.mxu0 0.0
      %1397 = vmatmul.mubr.f32.gmra.mxu0 %v1302
      %v1398 = vpop.f32.mrf.mxu0
      %v1399 = vadd.f32 0.0, %v1398
      %v1400 = vpop.f32.mrf.mxu0
      %1401 = vmatprep.mubr.f32.mxu0 0.0
      %1402 = vmatmul.mubr.f32.gmra.mxu0 %v1305
      %v1403 = vpop.f32.mrf.mxu0
      %v1404 = vadd.f32 0.0, %v1403
      %v1405 = vpop.f32.mrf.mxu0
      %1406 = vdwg.mxu0
      %v1407 = vmax.f32 %v1246, %v1374
      %v1408 = vmax.f32 %v1251, %v1379
      %v1409 = vmax.f32 %v1256, %v1384
      %v1410 = vmax.f32 %v1261, %v1389
      %v1411 = vmax.f32 %v1266, %v1394
      %v1412 = vmax.f32 %v1271, %v1399
      %v1413 = vmax.f32 %v1276, %v1404
      %v1414 = vld [vmem:[%s5] sm:$0xff]
      %v1415 = vld [vmem:[%s5 + $0x8] sm:$0xff]
      %v1416 = vld [vmem:[%s5 + $0x10] sm:$0xff]
      %v1417 = vld [vmem:[%s5 + $0x18] sm:$0xff]
      %v1418 = vld [vmem:[%s5 + $0x20] sm:$0xff]
      %v1419 = vld [vmem:[%s5 + $0x28] sm:$0xff]
      %v1420 = vld [vmem:[%s5 + $0x30] sm:$0xff]
      %v1421 = vld [vmem:[%s5 + $0x38] sm:$0xff]
      %v1422 = vld [vmem:[%s5 + $0x40] sm:$0xff]
      %v1423 = vld [vmem:[%s5 + $0x48] sm:$0xff]
      %v1424 = vld [vmem:[%s5 + $0x50] sm:$0xff]
      %v1425 = vld [vmem:[%s5 + $0x58] sm:$0xff]
      %v1426 = vld [vmem:[%s5 + $0x60] sm:$0xff]
      %v1427 = vld [vmem:[%s5 + $0x68] sm:$0xff]
      %vm1428 = vcmask 916480
      %v1430 = vsel %vm1428, %v1407, 0
      %v1433 = vsel %vm1428, %v1408, 0
      %v1436 = vsel %vm1428, %v1409, 0
      %v1439 = vsel %vm1428, %v1410, 0
      %v1442 = vsel %vm1428, %v1411, 0
      %v1445 = vsel %vm1428, %v1412, 0
      %v1448 = vsel %vm1428, %v1413, 0
      %1450 = vmatprep.subr.mxu0 0.0
      %1451 = vmatpush1.msra.mxu0 0.0
      %1452 = vmatprep.subr.mxu0 0.0
      %1453 = vmatpush1.msra.mxu0 0.0
      %1454 = vmatprep.subr.mxu0 0.0
      %1455 = vmatpush1.msra.mxu0 %v1427
      %1456 = vmatprep.subr.mxu0 0.0
      %1457 = vmatpush1.msra.mxu0 %v1426
      %1458 = vmatprep.subr.mxu0 0.0
      %1459 = vmatpush1.msra.mxu0 %v1425
      %1460 = vmatprep.subr.mxu0 0.0
      %1461 = vmatpush1.msra.mxu0 %v1424
      %1462 = vmatprep.subr.mxu0 0.0
      %1463 = vmatpush1.msra.mxu0 %v1423
      %1464 = vmatprep.subr.mxu0 0.0
      %1465 = vmatpush1.msra.mxu0 %v1422
      %1466 = vmatprep.subr.mxu0 0.0
      %1467 = vmatpush1.msra.mxu0 %v1421
      %1468 = vmatprep.subr.mxu0 0.0
      %1469 = vmatpush1.msra.mxu0 %v1420
      %1470 = vmatprep.subr.mxu0 0.0
      %1471 = vmatpush1.msra.mxu0 %v1419
      %1472 = vmatprep.subr.mxu0 0.0
      %1473 = vmatpush1.msra.mxu0 %v1418
      %1474 = vmatprep.subr.mxu0 0.0
      %1475 = vmatpush1.msra.mxu0 %v1417
      %1476 = vmatprep.subr.mxu0 0.0
      %1477 = vmatpush1.msra.mxu0 %v1416
      %1478 = vmatprep.subr.mxu0 0.0
      %1479 = vmatpush1.msra.mxu0 %v1415
      %1480 = vmatprep.subr.mxu0 0.0
      %1481 = vmatpush1.msra.mxu0 %v1414
      %1482 = vmatprep.subr.mxu0 0.0
      %1483 = vmatpush2.msra.mxu0 0.0
      %1484 = vmatprep.subr.mxu0 0.0
      %1485 = vmatpush2.msra.mxu0 0.0
      %1486 = vmatprep.subr.mxu0 0.0
      %1487 = vmatpush2.msra.mxu0 0.0
      %1488 = vmatprep.subr.mxu0 0.0
      %1489 = vmatpush2.msra.mxu0 0.0
      %1490 = vmatprep.subr.mxu0 0.0
      %1491 = vmatpush2.msra.mxu0 0.0
      %1492 = vmatprep.subr.mxu0 0.0
      %1493 = vmatpush2.msra.mxu0 0.0
      %1494 = vmatprep.subr.mxu0 0.0
      %1495 = vmatpush2.msra.mxu0 0.0
      %1496 = vmatprep.subr.mxu0 0.0
      %1497 = vmatpush2.msra.mxu0 0.0
      %1498 = vmatprep.subr.mxu0 0.0
      %1499 = vmatpush2.msra.mxu0 0.0
      %1500 = vmatprep.subr.mxu0 0.0
      %1501 = vmatpush2.msra.mxu0 0.0
      %1502 = vmatprep.subr.mxu0 0.0
      %1503 = vmatpush2.msra.mxu0 0.0
      %1504 = vmatprep.subr.mxu0 0.0
      %1505 = vmatpush2.msra.mxu0 0.0
      %1506 = vmatprep.subr.mxu0 0.0
      %1507 = vmatpush2.msra.mxu0 0.0
      %1508 = vmatprep.subr.mxu0 0.0
      %1509 = vmatpush2.msra.mxu0 0.0
      %1510 = vmatprep.subr.mxu0 0.0
      %1511 = vmatpush2.msra.mxu0 0.0
      %1512 = vmatprep.subr.mxu0 0.0
      %1513 = vmatpush2.msra.mxu0 0.0
      %1514 = vmatprep.mubr.f32.mxu0 0.0
      %1515 = vmatmul.mubr.f32.gmra.mxu0 %v1430
      %v1516 = vpop.f32.mrf.mxu0
      %v1517 = vadd.f32 0.0, %v1516
      %v1518 = vpop.f32.mrf.mxu0
      %1519 = vmatprep.mubr.f32.mxu0 0.0
      %1520 = vmatmul.mubr.f32.gmra.mxu0 %v1433
      %v1521 = vpop.f32.mrf.mxu0
      %v1522 = vadd.f32 0.0, %v1521
      %v1523 = vpop.f32.mrf.mxu0
      %1524 = vmatprep.mubr.f32.mxu0 0.0
      %1525 = vmatmul.mubr.f32.gmra.mxu0 %v1436
      %v1526 = vpop.f32.mrf.mxu0
      %v1527 = vadd.f32 0.0, %v1526
      %v1528 = vpop.f32.mrf.mxu0
      %1529 = vmatprep.mubr.f32.mxu0 0.0
      %1530 = vmatmul.mubr.f32.gmra.mxu0 %v1439
      %v1531 = vpop.f32.mrf.mxu0
      %v1532 = vadd.f32 0.0, %v1531
      %v1533 = vpop.f32.mrf.mxu0
      %1534 = vmatprep.mubr.f32.mxu0 0.0
      %1535 = vmatmul.mubr.f32.gmra.mxu0 %v1442
      %v1536 = vpop.f32.mrf.mxu0
      %v1537 = vadd.f32 0.0, %v1536
      %v1538 = vpop.f32.mrf.mxu0
      %1539 = vmatprep.mubr.f32.mxu0 0.0
      %1540 = vmatmul.mubr.f32.gmra.mxu0 %v1445
      %v1541 = vpop.f32.mrf.mxu0
      %v1542 = vadd.f32 0.0, %v1541
      %v1543 = vpop.f32.mrf.mxu0
      %1544 = vmatprep.mubr.f32.mxu0 0.0
      %1545 = vmatmul.mubr.f32.gmra.mxu0 %v1448
      %v1546 = vpop.f32.mrf.mxu0
      %v1547 = vadd.f32 0.0, %v1546
      %v1548 = vpop.f32.mrf.mxu0
      %1549 = vdwg.mxu0
      %v1550 = vld [vmem:[%s6] sm:$0xff]
      %v1551 = vld [vmem:[%s6 + $0x8] sm:$0xff]
      %v1552 = vld [vmem:[%s6 + $0x10] sm:$0xff]
      %v1553 = vld [vmem:[%s6 + $0x18] sm:$0xff]
      %v1554 = vld [vmem:[%s6 + $0x20] sm:$0xff]
      %v1555 = vld [vmem:[%s6 + $0x28] sm:$0xff]
      %v1556 = vld [vmem:[%s6 + $0x30] sm:$0xff]
      %v1557 = vld [vmem:[%s6 + $0x38] sm:$0xff]
      %v1558 = vld [vmem:[%s6 + $0x40] sm:$0xff]
      %v1559 = vld [vmem:[%s6 + $0x48] sm:$0xff]
      %v1560 = vld [vmem:[%s6 + $0x50] sm:$0xff]
      %v1561 = vld [vmem:[%s6 + $0x58] sm:$0xff]
      %v1562 = vld [vmem:[%s6 + $0x60] sm:$0xff]
      %v1563 = vld [vmem:[%s6 + $0x68] sm:$0xff]
      %1564 = vmatprep.subr.mxu0 0.0
      %1565 = vmatpush1.msra.mxu0 0.0
      %1566 = vmatprep.subr.mxu0 0.0
      %1567 = vmatpush1.msra.mxu0 0.0
      %1568 = vmatprep.subr.mxu0 0.0
      %1569 = vmatpush1.msra.mxu0 %v1563
      %1570 = vmatprep.subr.mxu0 0.0
      %1571 = vmatpush1.msra.mxu0 %v1562
      %1572 = vmatprep.subr.mxu0 0.0
      %1573 = vmatpush1.msra.mxu0 %v1561
      %1574 = vmatprep.subr.mxu0 0.0
      %1575 = vmatpush1.msra.mxu0 %v1560
      %1576 = vmatprep.subr.mxu0 0.0
      %1577 = vmatpush1.msra.mxu0 %v1559
      %1578 = vmatprep.subr.mxu0 0.0
      %1579 = vmatpush1.msra.mxu0 %v1558
      %1580 = vmatprep.subr.mxu0 0.0
      %1581 = vmatpush1.msra.mxu0 %v1557
      %1582 = vmatprep.subr.mxu0 0.0
      %1583 = vmatpush1.msra.mxu0 %v1556
      %1584 = vmatprep.subr.mxu0 0.0
      %1585 = vmatpush1.msra.mxu0 %v1555
      %1586 = vmatprep.subr.mxu0 0.0
      %1587 = vmatpush1.msra.mxu0 %v1554
      %1588 = vmatprep.subr.mxu0 0.0
      %1589 = vmatpush1.msra.mxu0 %v1553
      %1590 = vmatprep.subr.mxu0 0.0
      %1591 = vmatpush1.msra.mxu0 %v1552
      %1592 = vmatprep.subr.mxu0 0.0
      %1593 = vmatpush1.msra.mxu0 %v1551
      %1594 = vmatprep.subr.mxu0 0.0
      %1595 = vmatpush1.msra.mxu0 %v1550
      %1596 = vmatprep.subr.mxu0 0.0
      %1597 = vmatpush2.msra.mxu0 0.0
      %1598 = vmatprep.subr.mxu0 0.0
      %1599 = vmatpush2.msra.mxu0 0.0
      %1600 = vmatprep.subr.mxu0 0.0
      %1601 = vmatpush2.msra.mxu0 0.0
      %1602 = vmatprep.subr.mxu0 0.0
      %1603 = vmatpush2.msra.mxu0 0.0
      %1604 = vmatprep.subr.mxu0 0.0
      %1605 = vmatpush2.msra.mxu0 0.0
      %1606 = vmatprep.subr.mxu0 0.0
      %1607 = vmatpush2.msra.mxu0 0.0
      %1608 = vmatprep.subr.mxu0 0.0
      %1609 = vmatpush2.msra.mxu0 0.0
      %1610 = vmatprep.subr.mxu0 0.0
      %1611 = vmatpush2.msra.mxu0 0.0
      %1612 = vmatprep.subr.mxu0 0.0
      %1613 = vmatpush2.msra.mxu0 0.0
      %1614 = vmatprep.subr.mxu0 0.0
      %1615 = vmatpush2.msra.mxu0 0.0
      %1616 = vmatprep.subr.mxu0 0.0
      %1617 = vmatpush2.msra.mxu0 0.0
      %1618 = vmatprep.subr.mxu0 0.0
      %1619 = vmatpush2.msra.mxu0 0.0
      %1620 = vmatprep.subr.mxu0 0.0
      %1621 = vmatpush2.msra.mxu0 0.0
      %1622 = vmatprep.subr.mxu0 0.0
      %1623 = vmatpush2.msra.mxu0 0.0
      %1624 = vmatprep.subr.mxu0 0.0
      %1625 = vmatpush2.msra.mxu0 0.0
      %1626 = vmatprep.subr.mxu0 0.0
      %1627 = vmatpush2.msra.mxu0 0.0
      %1628 = vmatprep.mubr.f32.mxu0 0.0
      %1629 = vmatmul.mubr.f32.gmra.mxu0 %v1430
      %v1630 = vpop.f32.mrf.mxu0
      %v1631 = vadd.f32 0.0, %v1630
      %v1632 = vpop.f32.mrf.mxu0
      %1633 = vmatprep.mubr.f32.mxu0 0.0
      %1634 = vmatmul.mubr.f32.gmra.mxu0 %v1433
      %v1635 = vpop.f32.mrf.mxu0
      %v1636 = vadd.f32 0.0, %v1635
      %v1637 = vpop.f32.mrf.mxu0
      %1638 = vmatprep.mubr.f32.mxu0 0.0
      %1639 = vmatmul.mubr.f32.gmra.mxu0 %v1436
      %v1640 = vpop.f32.mrf.mxu0
      %v1641 = vadd.f32 0.0, %v1640
      %v1642 = vpop.f32.mrf.mxu0
      %1643 = vmatprep.mubr.f32.mxu0 0.0
      %1644 = vmatmul.mubr.f32.gmra.mxu0 %v1439
      %v1645 = vpop.f32.mrf.mxu0
      %v1646 = vadd.f32 0.0, %v1645
      %v1647 = vpop.f32.mrf.mxu0
      %1648 = vmatprep.mubr.f32.mxu0 0.0
      %1649 = vmatmul.mubr.f32.gmra.mxu0 %v1442
      %v1650 = vpop.f32.mrf.mxu0
      %v1651 = vadd.f32 0.0, %v1650
      %v1652 = vpop.f32.mrf.mxu0
      %1653 = vmatprep.mubr.f32.mxu0 0.0
      %1654 = vmatmul.mubr.f32.gmra.mxu0 %v1445
      %v1655 = vpop.f32.mrf.mxu0
      %v1656 = vadd.f32 0.0, %v1655
      %v1657 = vpop.f32.mrf.mxu0
      %1658 = vmatprep.mubr.f32.mxu0 0.0
      %1659 = vmatmul.mubr.f32.gmra.mxu0 %v1448
      %v1660 = vpop.f32.mrf.mxu0
      %v1661 = vadd.f32 0.0, %v1660
      %v1662 = vpop.f32.mrf.mxu0
      %1663 = vdwg.mxu0
      %v1664 = vmax.f32 %v1517, %v1631
      %v1665 = vmax.f32 %v1522, %v1636
      %v1666 = vmax.f32 %v1527, %v1641
      %v1667 = vmax.f32 %v1532, %v1646
      %v1668 = vmax.f32 %v1537, %v1651
      %v1669 = vmax.f32 %v1542, %v1656
      %v1670 = vmax.f32 %v1547, %v1661
      %v1671 = vpack.c.bf16 %v1665, %v1664
      %v1672 = vpack.c.bf16 %v1667, %v1666
      %v1673 = vpack.c.bf16 %v1669, %v1668
      %v1674 = vpack.c.bf16 %v1670, %v1670
      %v1675 = vld [vmem:[%s7] sm:$0xf]
      %v1676 = vld [vmem:[%s7 + $0x4] sm:$0xf]
      %v1677 = vld [vmem:[%s7 + $0x8] sm:$0xf]
      %v1678 = vld [vmem:[%s7 + $0xc] sm:$0xf]
      %v1679 = vld [vmem:[%s7 + $0x10] sm:$0xf]
      %v1680 = vld [vmem:[%s7 + $0x14] sm:$0xf]
      %v1681 = vld [vmem:[%s7 + $0x18] sm:$0xf]
      %s1682 = scalar_lea.vmem %s7, 28
      %v1683 = vld [vmem:[%s1682] sm:$0xf]
      %v1684 = vld [vmem:[%s1682 + $0x4] sm:$0xf]
      %v1685 = vld [vmem:[%s1682 + $0x8] sm:$0xf]
      %v1686 = vld [vmem:[%s1682 + $0xc] sm:$0xf]
      %v1687 = vld [vmem:[%s1682 + $0x10] sm:$0xf]
      %v1688 = vld [vmem:[%s1682 + $0x14] sm:$0xf]
      %v1689 = vld [vmem:[%s1682 + $0x18] sm:$0xf]
      %v1691 = vshrl.u32 %v1671, 16
      %v1693 = vshll.u32 %v1671, 16
      %v1695 = vrot.slane %v1693, 1
      %v1696 = vor.u32 %v1691, %v1695
      %v1698 = vshll.u32 %v1672, 16
      %v1700 = vrot.slane %v1698, 1
      %v1701 = vsel %vm566, %v1696, %v1700
      %v1702 = vshrl.u32 %v1672, 16
      %v1704 = vor.u32 %v1702, %v1700
      %v1706 = vshll.u32 %v1673, 16
      %v1708 = vrot.slane %v1706, 1
      %v1709 = vsel %vm566, %v1704, %v1708
      %v1710 = vshrl.u32 %v1673, 16
      %v1712 = vor.u32 %v1710, %v1708
      %v1714 = vshll.u32 %v1674, 16
      %v1716 = vrot.slane %v1714, 1
      %v1717 = vsel %vm566, %v1712, %v1716
      %v1718 = vshrl.u32 %v1674, 16
      %v1720 = vor.u32 %v1718, %v1716
      %v1728 = vunpack.c.l.b16 %v1683
      %v1729 = vunpack.c.l.b16 %v1684
      %v1730 = vunpack.c.l.b16 %v1685
      %v1731 = vunpack.c.l.b16 %v1686
      %v1732 = vunpack.c.l.b16 %v1687
      %v1733 = vunpack.c.l.b16 %v1688
      %v1734 = vunpack.c.l.b16 %v1689
      %v1735 = vpack.c.b16 %v1729, %v1728
      %v1736 = vpack.c.b16 %v1731, %v1730
      %v1737 = vpack.c.b16 %v1733, %v1732
      %v1738 = vpack.c.b16 %v1734, %v1734
      %vm1742 = vcmask 457728
      %v1744 = vsel %vm1742, %v1701, 0
      %v1747 = vsel %vm1742, %v1709, 0
      %v1750 = vsel %vm1742, %v1717, 0
      %v1753 = vsel %vm1742, %v1720, 0
      %vm1755 = vcmask 1043456
      %v1757 = vsel %vm1755, %v1738, 0
      %1759 = vmatprep.subr.bf16.mxu0 0
      %1760 = vmatpush1.bf16.msra.mxu0 0
      %1761 = vmatprep.subr.bf16.mxu0 0
      %1762 = vmatpush1.bf16.msra.mxu0 0
      %1763 = vmatprep.subr.bf16.mxu0 0
      %1764 = vmatpush1.bf16.msra.mxu0 0
      %1765 = vmatprep.subr.bf16.mxu0 0
      %1766 = vmatpush1.bf16.msra.mxu0 0
      %1767 = vmatprep.subr.bf16.mxu0 0
      %1768 = vmatpush1.bf16.msra.mxu0 %v1757
      %1769 = vmatprep.subr.bf16.mxu0 0
      %1770 = vmatpush1.bf16.msra.mxu0 %v1737
      %1771 = vmatprep.subr.bf16.mxu0 0
      %1772 = vmatpush1.bf16.msra.mxu0 %v1736
      %1773 = vmatprep.subr.bf16.mxu0 0
      %1774 = vmatpush1.bf16.msra.mxu0 %v1735
      %1775 = vmatprep.subr.bf16.mxu0 0
      %1776 = vmatpush2.bf16.msra.mxu0 0
      %1777 = vmatprep.subr.bf16.mxu0 0
      %1778 = vmatpush2.bf16.msra.mxu0 0
      %1779 = vmatprep.subr.bf16.mxu0 0
      %1780 = vmatpush2.bf16.msra.mxu0 0
      %1781 = vmatprep.subr.bf16.mxu0 0
      %1782 = vmatpush2.bf16.msra.mxu0 0
      %1783 = vmatprep.subr.bf16.mxu0 0
      %1784 = vmatpush2.bf16.msra.mxu0 0
      %1785 = vmatprep.subr.bf16.mxu0 0
      %1786 = vmatpush2.bf16.msra.mxu0 0
      %1787 = vmatprep.subr.bf16.mxu0 0
      %1788 = vmatpush2.bf16.msra.mxu0 0
      %1789 = vmatprep.subr.bf16.mxu0 0
      %1790 = vmatpush2.bf16.msra.mxu0 0
      %1791 = vmatprep.mubr.bf16.mxu0 0
      %1792 = vmatmul.mubr.bf16.gmra.mxu0 %v1744
      %v1793 = vpop.f32.mrf.mxu0
      %v1794 = vadd.f32 0.0, %v1793
      %v1795 = vpop.f32.mrf.mxu0
      %v1796 = vpop.f32.mrf.mxu0
      %v1797 = vadd.f32 0.0, %v1796
      %v1798 = vpop.f32.mrf.mxu0
      %1799 = vmatprep.mubr.bf16.mxu0 0
      %1800 = vmatmul.mubr.bf16.gmra.mxu0 %v1747
      %v1801 = vpop.f32.mrf.mxu0
      %v1802 = vadd.f32 0.0, %v1801
      %v1803 = vpop.f32.mrf.mxu0
      %v1804 = vpop.f32.mrf.mxu0
      %v1805 = vadd.f32 0.0, %v1804
      %v1806 = vpop.f32.mrf.mxu0
      %1807 = vmatprep.mubr.bf16.mxu0 0
      %1808 = vmatmul.mubr.bf16.gmra.mxu0 %v1750
      %v1809 = vpop.f32.mrf.mxu0
      %v1810 = vadd.f32 0.0, %v1809
      %v1811 = vpop.f32.mrf.mxu0
      %v1812 = vpop.f32.mrf.mxu0
      %v1813 = vadd.f32 0.0, %v1812
      %v1814 = vpop.f32.mrf.mxu0
      %1815 = vmatprep.mubr.bf16.mxu0 0
      %1816 = vmatmul.mubr.bf16.gmra.mxu0 %v1753
      %v1817 = vpop.f32.mrf.mxu0
      %v1818 = vadd.f32 0.0, %v1817
      %v1819 = vpop.f32.mrf.mxu0
      %v1820 = vpop.f32.mrf.mxu0
      %v1821 = vpop.f32.mrf.mxu0
      %1822 = vdwg.mxu0
      %v1830 = vunpack.c.l.b16 %v1675
      %v1831 = vunpack.c.l.b16 %v1676
      %v1832 = vunpack.c.l.b16 %v1677
      %v1833 = vunpack.c.l.b16 %v1678
      %v1834 = vunpack.c.l.b16 %v1679
      %v1835 = vunpack.c.l.b16 %v1680
      %v1836 = vunpack.c.l.b16 %v1681
      %v1837 = vpack.c.b16 %v1831, %v1830
      %v1838 = vpack.c.b16 %v1833, %v1832
      %v1839 = vpack.c.b16 %v1835, %v1834
      %v1840 = vpack.c.b16 %v1836, %v1836
      %v1844 = vsel %vm1742, %v1671, 0
      %v1846 = vsel %vm1742, %v1672, 0
      %v1848 = vsel %vm1742, %v1673, 0
      %v1850 = vsel %vm1742, %v1674, 0
      %v1853 = vsel %vm1755, %v1840, 0
      %1855 = vmatprep.subr.bf16.mxu0 0
      %1856 = vmatpush1.bf16.msra.mxu0 0
      %1857 = vmatprep.subr.bf16.mxu0 0
      %1858 = vmatpush1.bf16.msra.mxu0 0
      %1859 = vmatprep.subr.bf16.mxu0 0
      %1860 = vmatpush1.bf16.msra.mxu0 0
      %1861 = vmatprep.subr.bf16.mxu0 0
      %1862 = vmatpush1.bf16.msra.mxu0 0
      %1863 = vmatprep.subr.bf16.mxu0 0
      %1864 = vmatpush1.bf16.msra.mxu0 %v1853
      %1865 = vmatprep.subr.bf16.mxu0 0
      %1866 = vmatpush1.bf16.msra.mxu0 %v1839
      %1867 = vmatprep.subr.bf16.mxu0 0
      %1868 = vmatpush1.bf16.msra.mxu0 %v1838
      %1869 = vmatprep.subr.bf16.mxu0 0
      %1870 = vmatpush1.bf16.msra.mxu0 %v1837
      %1871 = vmatprep.subr.bf16.mxu0 0
      %1872 = vmatpush2.bf16.msra.mxu0 0
      %1873 = vmatprep.subr.bf16.mxu0 0
      %1874 = vmatpush2.bf16.msra.mxu0 0
      %1875 = vmatprep.subr.bf16.mxu0 0
      %1876 = vmatpush2.bf16.msra.mxu0 0
      %1877 = vmatprep.subr.bf16.mxu0 0
      %1878 = vmatpush2.bf16.msra.mxu0 0
      %1879 = vmatprep.subr.bf16.mxu0 0
      %1880 = vmatpush2.bf16.msra.mxu0 0
      %1881 = vmatprep.subr.bf16.mxu0 0
      %1882 = vmatpush2.bf16.msra.mxu0 0
      %1883 = vmatprep.subr.bf16.mxu0 0
      %1884 = vmatpush2.bf16.msra.mxu0 0
      %1885 = vmatprep.subr.bf16.mxu0 0
      %1886 = vmatpush2.bf16.msra.mxu0 0
      %1887 = vmatprep.mubr.bf16.mxu0 0
      %1888 = vmatmul.mubr.bf16.gmra.mxu0 %v1844
      %v1889 = vpop.f32.mrf.mxu0
      %v1890 = vadd.f32 %v1794, %v1889
      %v1891 = vpop.f32.mrf.mxu0
      %v1892 = vpop.f32.mrf.mxu0
      %v1893 = vadd.f32 %v1797, %v1892
      %v1894 = vpop.f32.mrf.mxu0
      %1895 = vmatprep.mubr.bf16.mxu0 0
      %1896 = vmatmul.mubr.bf16.gmra.mxu0 %v1846
      %v1897 = vpop.f32.mrf.mxu0
      %v1898 = vadd.f32 %v1802, %v1897
      %v1899 = vpop.f32.mrf.mxu0
      %v1900 = vpop.f32.mrf.mxu0
      %v1901 = vadd.f32 %v1805, %v1900
      %v1902 = vpop.f32.mrf.mxu0
      %1903 = vmatprep.mubr.bf16.mxu0 0
      %1904 = vmatmul.mubr.bf16.gmra.mxu0 %v1848
      %v1905 = vpop.f32.mrf.mxu0
      %v1906 = vadd.f32 %v1810, %v1905
      %v1907 = vpop.f32.mrf.mxu0
      %v1908 = vpop.f32.mrf.mxu0
      %v1909 = vadd.f32 %v1813, %v1908
      %v1910 = vpop.f32.mrf.mxu0
      %1911 = vmatprep.mubr.bf16.mxu0 0
      %1912 = vmatmul.mubr.bf16.gmra.mxu0 %v1850
      %v1913 = vpop.f32.mrf.mxu0
      %v1914 = vadd.f32 %v1818, %v1913
      %v1915 = vpop.f32.mrf.mxu0
      %v1916 = vpop.f32.mrf.mxu0
      %v1917 = vpop.f32.mrf.mxu0
      %1918 = vdwg.mxu0
      %s1919 = scalar_lea.vmem %s7, 56
      %v1920 = vld [vmem:[%s1919] sm:$0xf]
      %v1921 = vld [vmem:[%s1919 + $0x4] sm:$0xf]
      %v1922 = vld [vmem:[%s1919 + $0x8] sm:$0xf]
      %v1923 = vld [vmem:[%s1919 + $0xc] sm:$0xf]
      %v1924 = vld [vmem:[%s1919 + $0x10] sm:$0xf]
      %v1925 = vld [vmem:[%s1919 + $0x14] sm:$0xf]
      %v1926 = vld [vmem:[%s1919 + $0x18] sm:$0xf]
      %v1931 = vrot.slane %v1671, 1
      %v1932 = vrot.slane %v1672, 1
      %v1933 = vsel %vm930, %v1931, %v1932
      %v1934 = vrot.slane %v1673, 1
      %v1935 = vsel %vm930, %v1932, %v1934
      %v1936 = vrot.slane %v1674, 1
      %v1937 = vsel %vm930, %v1934, %v1936
      %v1945 = vunpack.c.l.b16 %v1920
      %v1946 = vunpack.c.l.b16 %v1921
      %v1947 = vunpack.c.l.b16 %v1922
      %v1948 = vunpack.c.l.b16 %v1923
      %v1949 = vunpack.c.l.b16 %v1924
      %v1950 = vunpack.c.l.b16 %v1925
      %v1951 = vunpack.c.l.b16 %v1926
      %v1952 = vpack.c.b16 %v1946, %v1945
      %v1953 = vpack.c.b16 %v1948, %v1947
      %v1954 = vpack.c.b16 %v1950, %v1949
      %v1955 = vpack.c.b16 %v1951, %v1951
      %v1960 = vsel %vm1742, %v1933, 0
      %v1963 = vsel %vm1742, %v1935, 0
      %v1966 = vsel %vm1742, %v1937, 0
      %v1969 = vsel %vm1742, %v1936, 0
      %v1972 = vsel %vm1755, %v1955, 0
      %1974 = vmatprep.subr.bf16.mxu0 0
      %1975 = vmatpush1.bf16.msra.mxu0 0
      %1976 = vmatprep.subr.bf16.mxu0 0
      %1977 = vmatpush1.bf16.msra.mxu0 0
      %1978 = vmatprep.subr.bf16.mxu0 0
      %1979 = vmatpush1.bf16.msra.mxu0 0
      %1980 = vmatprep.subr.bf16.mxu0 0
      %1981 = vmatpush1.bf16.msra.mxu0 0
      %1982 = vmatprep.subr.bf16.mxu0 0
      %1983 = vmatpush1.bf16.msra.mxu0 %v1972
      %1984 = vmatprep.subr.bf16.mxu0 0
      %1985 = vmatpush1.bf16.msra.mxu0 %v1954
      %1986 = vmatprep.subr.bf16.mxu0 0
      %1987 = vmatpush1.bf16.msra.mxu0 %v1953
      %1988 = vmatprep.subr.bf16.mxu0 0
      %1989 = vmatpush1.bf16.msra.mxu0 %v1952
      %1990 = vmatprep.subr.bf16.mxu0 0
      %1991 = vmatpush2.bf16.msra.mxu0 0
      %1992 = vmatprep.subr.bf16.mxu0 0
      %1993 = vmatpush2.bf16.msra.mxu0 0
      %1994 = vmatprep.subr.bf16.mxu0 0
      %1995 = vmatpush2.bf16.msra.mxu0 0
      %1996 = vmatprep.subr.bf16.mxu0 0
      %1997 = vmatpush2.bf16.msra.mxu0 0
      %1998 = vmatprep.subr.bf16.mxu0 0
      %1999 = vmatpush2.bf16.msra.mxu0 0
      %2000 = vmatprep.subr.bf16.mxu0 0
      %2001 = vmatpush2.bf16.msra.mxu0 0
      %2002 = vmatprep.subr.bf16.mxu0 0
      %2003 = vmatpush2.bf16.msra.mxu0 0
      %2004 = vmatprep.subr.bf16.mxu0 0
      %2005 = vmatpush2.bf16.msra.mxu0 0
      %2006 = vmatprep.mubr.bf16.mxu0 0
      %2007 = vmatmul.mubr.bf16.gmra.mxu0 %v1960
      %v2008 = vpop.f32.mrf.mxu0
      %v2009 = vadd.f32 0.0, %v2008
      %v2010 = vpop.f32.mrf.mxu0
      %v2011 = vpop.f32.mrf.mxu0
      %v2012 = vadd.f32 0.0, %v2011
      %v2013 = vpop.f32.mrf.mxu0
      %2014 = vmatprep.mubr.bf16.mxu0 0
      %2015 = vmatmul.mubr.bf16.gmra.mxu0 %v1963
      %v2016 = vpop.f32.mrf.mxu0
      %v2017 = vadd.f32 0.0, %v2016
      %v2018 = vpop.f32.mrf.mxu0
      %v2019 = vpop.f32.mrf.mxu0
      %v2020 = vadd.f32 0.0, %v2019
      %v2021 = vpop.f32.mrf.mxu0
      %2022 = vmatprep.mubr.bf16.mxu0 0
      %2023 = vmatmul.mubr.bf16.gmra.mxu0 %v1966
      %v2024 = vpop.f32.mrf.mxu0
      %v2025 = vadd.f32 0.0, %v2024
      %v2026 = vpop.f32.mrf.mxu0
      %v2027 = vpop.f32.mrf.mxu0
      %v2028 = vadd.f32 0.0, %v2027
      %v2029 = vpop.f32.mrf.mxu0
      %2030 = vmatprep.mubr.bf16.mxu0 0
      %2031 = vmatmul.mubr.bf16.gmra.mxu0 %v1969
      %v2032 = vpop.f32.mrf.mxu0
      %v2033 = vadd.f32 0.0, %v2032
      %v2034 = vpop.f32.mrf.mxu0
      %v2035 = vpop.f32.mrf.mxu0
      %v2036 = vpop.f32.mrf.mxu0
      %2037 = vdwg.mxu0
      %v2038 = vadd.f32 %v1890, %v2009
      %v2039 = vadd.f32 %v1893, %v2012
      %v2040 = vadd.f32 %v1898, %v2017
      %v2041 = vadd.f32 %v1901, %v2020
      %v2042 = vadd.f32 %v1906, %v2025
      %v2043 = vadd.f32 %v1909, %v2028
      %v2044 = vadd.f32 %v1914, %v2033
      %v2045 = vld [vmem:[%s8] sm:$0x1]
      %v2047 = vlaneseq
      %v2048 = vshrl.u32 %v2047, 7
      %v2049 = vsub.s32 0, %v2048
      %v2050 = vrot.slane %v2045, %v2049
      %v2052 = vadd.f32 %v2038, %v2050
      %v2053 = vadd.f32 %v2039, %v2050
      %v2054 = vadd.f32 %v2040, %v2050
      %v2055 = vadd.f32 %v2041, %v2050
      %v2056 = vadd.f32 %v2042, %v2050
      %v2057 = vadd.f32 %v2043, %v2050
      %v2058 = vadd.f32 %v2044, %v2050
      %v2059 = vmax.f32 %v2052, 0.0
      %v2060 = vmax.f32 %v2053, 0.0
      %v2061 = vmax.f32 %v2054, 0.0
      %v2062 = vmax.f32 %v2055, 0.0
      %v2063 = vmax.f32 %v2056, 0.0
      %v2064 = vmax.f32 %v2057, 0.0
      %v2065 = vmax.f32 %v2058, 0.0
      %v2066 = vld [vmem:[%s9] sm:$0xff]
      %v2067 = vld [vmem:[%s9 + $0x8] sm:$0xff]
      %vm2068 = vcmask 441344
      %v2070 = vsel %vm2068, %v2066, 0
      %v2073 = vsel %vm2068, %v2067, 0
      %v2076 = vsel %vm1175, %v2065, 0
      %2078 = vmatprep.subr.mxu0 0.0
      %2079 = vmatpush1.msra.mxu0 0.0
      %2080 = vmatprep.subr.mxu0 0.0
      %2081 = vmatpush1.msra.mxu0 0.0
      %2082 = vmatprep.subr.mxu0 0.0
      %2083 = vmatpush1.msra.mxu0 0.0
      %2084 = vmatprep.subr.mxu0 0.0
      %2085 = vmatpush1.msra.mxu0 0.0
      %2086 = vmatprep.subr.mxu0 0.0
      %2087 = vmatpush1.msra.mxu0 0.0
      %2088 = vmatprep.subr.mxu0 0.0
      %2089 = vmatpush1.msra.mxu0 0.0
      %2090 = vmatprep.subr.mxu0 0.0
      %2091 = vmatpush1.msra.mxu0 0.0
      %2092 = vmatprep.subr.mxu0 0.0
      %2093 = vmatpush1.msra.mxu0 0.0
      %2094 = vmatprep.subr.mxu0 0.0
      %2095 = vmatpush1.msra.mxu0 0.0
      %2096 = vmatprep.subr.mxu0 0.0
      %2097 = vmatpush1.msra.mxu0 %v2076
      %2098 = vmatprep.subr.mxu0 0.0
      %2099 = vmatpush1.msra.mxu0 %v2064
      %2100 = vmatprep.subr.mxu0 0.0
      %2101 = vmatpush1.msra.mxu0 %v2063
      %2102 = vmatprep.subr.mxu0 0.0
      %2103 = vmatpush1.msra.mxu0 %v2062
      %2104 = vmatprep.subr.mxu0 0.0
      %2105 = vmatpush1.msra.mxu0 %v2061
      %2106 = vmatprep.subr.mxu0 0.0
      %2107 = vmatpush1.msra.mxu0 %v2060
      %2108 = vmatprep.subr.mxu0 0.0
      %2109 = vmatpush1.msra.mxu0 %v2059
      %2110 = vmatprep.subr.mxu0 0.0
      %2111 = vmatpush2.msra.mxu0 0.0
      %2112 = vmatprep.subr.mxu0 0.0
      %2113 = vmatpush2.msra.mxu0 0.0
      %2114 = vmatprep.subr.mxu0 0.0
      %2115 = vmatpush2.msra.mxu0 0.0
      %2116 = vmatprep.subr.mxu0 0.0
      %2117 = vmatpush2.msra.mxu0 0.0
      %2118 = vmatprep.subr.mxu0 0.0
      %2119 = vmatpush2.msra.mxu0 0.0
      %2120 = vmatprep.subr.mxu0 0.0
      %2121 = vmatpush2.msra.mxu0 0.0
      %2122 = vmatprep.subr.mxu0 0.0
      %2123 = vmatpush2.msra.mxu0 0.0
      %2124 = vmatprep.subr.mxu0 0.0
      %2125 = vmatpush2.msra.mxu0 0.0
      %2126 = vmatprep.subr.mxu0 0.0
      %2127 = vmatpush2.msra.mxu0 0.0
      %2128 = vmatprep.subr.mxu0 0.0
      %2129 = vmatpush2.msra.mxu0 0.0
      %2130 = vmatprep.subr.mxu0 0.0
      %2131 = vmatpush2.msra.mxu0 0.0
      %2132 = vmatprep.subr.mxu0 0.0
      %2133 = vmatpush2.msra.mxu0 0.0
      %2134 = vmatprep.subr.mxu0 0.0
      %2135 = vmatpush2.msra.mxu0 0.0
      %2136 = vmatprep.subr.mxu0 0.0
      %2137 = vmatpush2.msra.mxu0 0.0
      %2138 = vmatprep.subr.mxu0 0.0
      %2139 = vmatpush2.msra.mxu0 0.0
      %2140 = vmatprep.subr.mxu0 0.0
      %2141 = vmatpush2.msra.mxu0 0.0
      %2142 = vmatprep.mubr.f32.mxu0 0.0
      %2143 = vmatmul.mubr.f32.gmra.mxu0 %v2070
      %v2144 = vpop.f32.mrf.mxu0
      %v2145 = vadd.f32 0.0, %v2144
      %v2146 = vpop.f32.mrf.mxu0
      %2147 = vmatprep.mubr.f32.mxu0 0.0
      %2148 = vmatmul.mubr.f32.gmra.mxu0 %v2073
      %v2149 = vpop.f32.mrf.mxu0
      %v2150 = vadd.f32 0.0, %v2149
      %v2151 = vpop.f32.mrf.mxu0
      %2152 = vdwg.mxu0
      %v2153 = vld [vmem:[%s10] sm:$0xff]
      %v2154 = vld [vmem:[%s10 + $0x8] sm:$0xff]
      %v2156 = vsel %vm2068, %v2153, 0
      %v2159 = vsel %vm2068, %v2154, 0
      %2161 = vmatprep.subr.mxu0 0.0
      %2162 = vmatpush1.msra.mxu0 0.0
      %2163 = vmatprep.subr.mxu0 0.0
      %2164 = vmatpush1.msra.mxu0 0.0
      %2165 = vmatprep.subr.mxu0 0.0
      %2166 = vmatpush1.msra.mxu0 0.0
      %2167 = vmatprep.subr.mxu0 0.0
      %2168 = vmatpush1.msra.mxu0 0.0
      %2169 = vmatprep.subr.mxu0 0.0
      %2170 = vmatpush1.msra.mxu0 0.0
      %2171 = vmatprep.subr.mxu0 0.0
      %2172 = vmatpush1.msra.mxu0 0.0
      %2173 = vmatprep.subr.mxu0 0.0
      %2174 = vmatpush1.msra.mxu0 0.0
      %2175 = vmatprep.subr.mxu0 0.0
      %2176 = vmatpush1.msra.mxu0 0.0
      %2177 = vmatprep.subr.mxu0 0.0
      %2178 = vmatpush1.msra.mxu0 0.0
      %2179 = vmatprep.subr.mxu0 0.0
      %2180 = vmatpush1.msra.mxu0 %v2076
      %2181 = vmatprep.subr.mxu0 0.0
      %2182 = vmatpush1.msra.mxu0 %v2064
      %2183 = vmatprep.subr.mxu0 0.0
      %2184 = vmatpush1.msra.mxu0 %v2063
      %2185 = vmatprep.subr.mxu0 0.0
      %2186 = vmatpush1.msra.mxu0 %v2062
      %2187 = vmatprep.subr.mxu0 0.0
      %2188 = vmatpush1.msra.mxu0 %v2061
      %2189 = vmatprep.subr.mxu0 0.0
      %2190 = vmatpush1.msra.mxu0 %v2060
      %2191 = vmatprep.subr.mxu0 0.0
      %2192 = vmatpush1.msra.mxu0 %v2059
      %2193 = vmatprep.subr.mxu0 0.0
      %2194 = vmatpush2.msra.mxu0 0.0
      %2195 = vmatprep.subr.mxu0 0.0
      %2196 = vmatpush2.msra.mxu0 0.0
      %2197 = vmatprep.subr.mxu0 0.0
      %2198 = vmatpush2.msra.mxu0 0.0
      %2199 = vmatprep.subr.mxu0 0.0
      %2200 = vmatpush2.msra.mxu0 0.0
      %2201 = vmatprep.subr.mxu0 0.0
      %2202 = vmatpush2.msra.mxu0 0.0
      %2203 = vmatprep.subr.mxu0 0.0
      %2204 = vmatpush2.msra.mxu0 0.0
      %2205 = vmatprep.subr.mxu0 0.0
      %2206 = vmatpush2.msra.mxu0 0.0
      %2207 = vmatprep.subr.mxu0 0.0
      %2208 = vmatpush2.msra.mxu0 0.0
      %2209 = vmatprep.subr.mxu0 0.0
      %2210 = vmatpush2.msra.mxu0 0.0
      %2211 = vmatprep.subr.mxu0 0.0
      %2212 = vmatpush2.msra.mxu0 0.0
      %2213 = vmatprep.subr.mxu0 0.0
      %2214 = vmatpush2.msra.mxu0 0.0
      %2215 = vmatprep.subr.mxu0 0.0
      %2216 = vmatpush2.msra.mxu0 0.0
      %2217 = vmatprep.subr.mxu0 0.0
      %2218 = vmatpush2.msra.mxu0 0.0
      %2219 = vmatprep.subr.mxu0 0.0
      %2220 = vmatpush2.msra.mxu0 0.0
      %2221 = vmatprep.subr.mxu0 0.0
      %2222 = vmatpush2.msra.mxu0 0.0
      %2223 = vmatprep.subr.mxu0 0.0
      %2224 = vmatpush2.msra.mxu0 0.0
      %2225 = vmatprep.mubr.f32.mxu0 0.0
      %2226 = vmatmul.mubr.f32.gmra.mxu0 %v2156
      %v2227 = vpop.f32.mrf.mxu0
      %v2228 = vadd.f32 0.0, %v2227
      %v2229 = vpop.f32.mrf.mxu0
      %2230 = vmatprep.mubr.f32.mxu0 0.0
      %2231 = vmatmul.mubr.f32.gmra.mxu0 %v2159
      %v2232 = vpop.f32.mrf.mxu0
      %v2233 = vadd.f32 0.0, %v2232
      %v2234 = vpop.f32.mrf.mxu0
      %2235 = vdwg.mxu0
      %v2236 = vmax.f32 %v2145, %v2228
      %v2237 = vmax.f32 %v2150, %v2233
      %v2238 = vld [vmem:[%s11] sm:$0xff]
      %v2239 = vld [vmem:[%s11 + $0x8] sm:$0xff]
      %v2240 = vld [vmem:[%s11 + $0x10] sm:$0xff]
      %v2241 = vld [vmem:[%s11 + $0x18] sm:$0xff]
      %v2242 = vld [vmem:[%s11 + $0x20] sm:$0xff]
      %v2243 = vld [vmem:[%s11 + $0x28] sm:$0xff]
      %v2244 = vld [vmem:[%s11 + $0x30] sm:$0xff]
      %v2245 = vld [vmem:[%s11 + $0x38] sm:$0xff]
      %v2246 = vld [vmem:[%s11 + $0x40] sm:$0xff]
      %v2247 = vld [vmem:[%s11 + $0x48] sm:$0xff]
      %vm2248 = vcmask 654336
      %v2250 = vsel %vm2248, %v2236, 0
      %v2253 = vsel %vm2248, %v2237, 0
      %2255 = vmatprep.subr.mxu0 0.0
      %2256 = vmatpush1.msra.mxu0 0.0
      %2257 = vmatprep.subr.mxu0 0.0
      %2258 = vmatpush1.msra.mxu0 0.0
      %2259 = vmatprep.subr.mxu0 0.0
      %2260 = vmatpush1.msra.mxu0 0.0
      %2261 = vmatprep.subr.mxu0 0.0
      %2262 = vmatpush1.msra.mxu0 0.0
      %2263 = vmatprep.subr.mxu0 0.0
      %2264 = vmatpush1.msra.mxu0 0.0
      %2265 = vmatprep.subr.mxu0 0.0
      %2266 = vmatpush1.msra.mxu0 0.0
      %2267 = vmatprep.subr.mxu0 0.0
      %2268 = vmatpush1.msra.mxu0 %v2247
      %2269 = vmatprep.subr.mxu0 0.0
      %2270 = vmatpush1.msra.mxu0 %v2246
      %2271 = vmatprep.subr.mxu0 0.0
      %2272 = vmatpush1.msra.mxu0 %v2245
      %2273 = vmatprep.subr.mxu0 0.0
      %2274 = vmatpush1.msra.mxu0 %v2244
      %2275 = vmatprep.subr.mxu0 0.0
      %2276 = vmatpush1.msra.mxu0 %v2243
      %2277 = vmatprep.subr.mxu0 0.0
      %2278 = vmatpush1.msra.mxu0 %v2242
      %2279 = vmatprep.subr.mxu0 0.0
      %2280 = vmatpush1.msra.mxu0 %v2241
      %2281 = vmatprep.subr.mxu0 0.0
      %2282 = vmatpush1.msra.mxu0 %v2240
      %2283 = vmatprep.subr.mxu0 0.0
      %2284 = vmatpush1.msra.mxu0 %v2239
      %2285 = vmatprep.subr.mxu0 0.0
      %2286 = vmatpush1.msra.mxu0 %v2238
      %2287 = vmatprep.subr.mxu0 0.0
      %2288 = vmatpush2.msra.mxu0 0.0
      %2289 = vmatprep.subr.mxu0 0.0
      %2290 = vmatpush2.msra.mxu0 0.0
      %2291 = vmatprep.subr.mxu0 0.0
      %2292 = vmatpush2.msra.mxu0 0.0
      %2293 = vmatprep.subr.mxu0 0.0
      %2294 = vmatpush2.msra.mxu0 0.0
      %2295 = vmatprep.subr.mxu0 0.0
      %2296 = vmatpush2.msra.mxu0 0.0
      %2297 = vmatprep.subr.mxu0 0.0
      %2298 = vmatpush2.msra.mxu0 0.0
      %2299 = vmatprep.subr.mxu0 0.0
      %2300 = vmatpush2.msra.mxu0 0.0
      %2301 = vmatprep.subr.mxu0 0.0
      %2302 = vmatpush2.msra.mxu0 0.0
      %2303 = vmatprep.subr.mxu0 0.0
      %2304 = vmatpush2.msra.mxu0 0.0
      %2305 = vmatprep.subr.mxu0 0.0
      %2306 = vmatpush2.msra.mxu0 0.0
      %2307 = vmatprep.subr.mxu0 0.0
      %2308 = vmatpush2.msra.mxu0 0.0
      %2309 = vmatprep.subr.mxu0 0.0
      %2310 = vmatpush2.msra.mxu0 0.0
      %2311 = vmatprep.subr.mxu0 0.0
      %2312 = vmatpush2.msra.mxu0 0.0
      %2313 = vmatprep.subr.mxu0 0.0
      %2314 = vmatpush2.msra.mxu0 0.0
      %2315 = vmatprep.subr.mxu0 0.0
      %2316 = vmatpush2.msra.mxu0 0.0
      %2317 = vmatprep.subr.mxu0 0.0
      %2318 = vmatpush2.msra.mxu0 0.0
      %2319 = vmatprep.mubr.f32.mxu0 0.0
      %2320 = vmatmul.mubr.f32.gmra.mxu0 %v2250
      %v2321 = vpop.f32.mrf.mxu0
      %v2322 = vadd.f32 0.0, %v2321
      %v2323 = vpop.f32.mrf.mxu0
      %2324 = vmatprep.mubr.f32.mxu0 0.0
      %2325 = vmatmul.mubr.f32.gmra.mxu0 %v2253
      %v2326 = vpop.f32.mrf.mxu0
      %v2327 = vadd.f32 0.0, %v2326
      %v2328 = vpop.f32.mrf.mxu0
      %2329 = vdwg.mxu0
      %v2330 = vld [vmem:[%s12] sm:$0xff]
      %v2331 = vld [vmem:[%s12 + $0x8] sm:$0xff]
      %v2332 = vld [vmem:[%s12 + $0x10] sm:$0xff]
      %v2333 = vld [vmem:[%s12 + $0x18] sm:$0xff]
      %v2334 = vld [vmem:[%s12 + $0x20] sm:$0xff]
      %v2335 = vld [vmem:[%s12 + $0x28] sm:$0xff]
      %v2336 = vld [vmem:[%s12 + $0x30] sm:$0xff]
      %v2337 = vld [vmem:[%s12 + $0x38] sm:$0xff]
      %v2338 = vld [vmem:[%s12 + $0x40] sm:$0xff]
      %v2339 = vld [vmem:[%s12 + $0x48] sm:$0xff]
      %2340 = vmatprep.subr.mxu0 0.0
      %2341 = vmatpush1.msra.mxu0 0.0
      %2342 = vmatprep.subr.mxu0 0.0
      %2343 = vmatpush1.msra.mxu0 0.0
      %2344 = vmatprep.subr.mxu0 0.0
      %2345 = vmatpush1.msra.mxu0 0.0
      %2346 = vmatprep.subr.mxu0 0.0
      %2347 = vmatpush1.msra.mxu0 0.0
      %2348 = vmatprep.subr.mxu0 0.0
      %2349 = vmatpush1.msra.mxu0 0.0
      %2350 = vmatprep.subr.mxu0 0.0
      %2351 = vmatpush1.msra.mxu0 0.0
      %2352 = vmatprep.subr.mxu0 0.0
      %2353 = vmatpush1.msra.mxu0 %v2339
      %2354 = vmatprep.subr.mxu0 0.0
      %2355 = vmatpush1.msra.mxu0 %v2338
      %2356 = vmatprep.subr.mxu0 0.0
      %2357 = vmatpush1.msra.mxu0 %v2337
      %2358 = vmatprep.subr.mxu0 0.0
      %2359 = vmatpush1.msra.mxu0 %v2336
      %2360 = vmatprep.subr.mxu0 0.0
      %2361 = vmatpush1.msra.mxu0 %v2335
      %2362 = vmatprep.subr.mxu0 0.0
      %2363 = vmatpush1.msra.mxu0 %v2334
      %2364 = vmatprep.subr.mxu0 0.0
      %2365 = vmatpush1.msra.mxu0 %v2333
      %2366 = vmatprep.subr.mxu0 0.0
      %2367 = vmatpush1.msra.mxu0 %v2332
      %2368 = vmatprep.subr.mxu0 0.0
      %2369 = vmatpush1.msra.mxu0 %v2331
      %2370 = vmatprep.subr.mxu0 0.0
      %2371 = vmatpush1.msra.mxu0 %v2330
      %2372 = vmatprep.subr.mxu0 0.0
      %2373 = vmatpush2.msra.mxu0 0.0
      %2374 = vmatprep.subr.mxu0 0.0
      %2375 = vmatpush2.msra.mxu0 0.0
      %2376 = vmatprep.subr.mxu0 0.0
      %2377 = vmatpush2.msra.mxu0 0.0
      %2378 = vmatprep.subr.mxu0 0.0
      %2379 = vmatpush2.msra.mxu0 0.0
      %2380 = vmatprep.subr.mxu0 0.0
      %2381 = vmatpush2.msra.mxu0 0.0
      %2382 = vmatprep.subr.mxu0 0.0
      %2383 = vmatpush2.msra.mxu0 0.0
      %2384 = vmatprep.subr.mxu0 0.0
      %2385 = vmatpush2.msra.mxu0 0.0
      %2386 = vmatprep.subr.mxu0 0.0
      %2387 = vmatpush2.msra.mxu0 0.0
      %2388 = vmatprep.subr.mxu0 0.0
      %2389 = vmatpush2.msra.mxu0 0.0
      %2390 = vmatprep.subr.mxu0 0.0
      %2391 = vmatpush2.msra.mxu0 0.0
      %2392 = vmatprep.subr.mxu0 0.0
      %2393 = vmatpush2.msra.mxu0 0.0
      %2394 = vmatprep.subr.mxu0 0.0
      %2395 = vmatpush2.msra.mxu0 0.0
      %2396 = vmatprep.subr.mxu0 0.0
      %2397 = vmatpush2.msra.mxu0 0.0
      %2398 = vmatprep.subr.mxu0 0.0
      %2399 = vmatpush2.msra.mxu0 0.0
      %2400 = vmatprep.subr.mxu0 0.0
      %2401 = vmatpush2.msra.mxu0 0.0
      %2402 = vmatprep.subr.mxu0 0.0
      %2403 = vmatpush2.msra.mxu0 0.0
      %2404 = vmatprep.mubr.f32.mxu0 0.0
      %2405 = vmatmul.mubr.f32.gmra.mxu0 %v2250
      %v2406 = vpop.f32.mrf.mxu0
      %v2407 = vadd.f32 0.0, %v2406
      %v2408 = vpop.f32.mrf.mxu0
      %2409 = vmatprep.mubr.f32.mxu0 0.0
      %2410 = vmatmul.mubr.f32.gmra.mxu0 %v2253
      %v2411 = vpop.f32.mrf.mxu0
      %v2412 = vadd.f32 0.0, %v2411
      %v2413 = vpop.f32.mrf.mxu0
      %2414 = vdwg.mxu0
      %v2415 = vmax.f32 %v2322, %v2407
      %v2416 = vmax.f32 %v2327, %v2412
      %v2417 = vld [vmem:[%s13] sm:$0xff]
      %v2418 = vld [vmem:[%s13 + $0x8] sm:$0xff]
      %v2419 = vmul.f32 %v2415, %v2417
      %v2420 = vmul.f32 %v2416, %v2418
      %vm2421 = vcmask 261120
      %v2422 = vsel %vm2421, %v2419, 0.0
      %2423 = vadd.xlane.f32.xlu0 %v2422
      %v2424 = vpop.xlane.xlu0 %2423
      %v2425 = vsel %vm2421, %v2420, 0.0
      %2426 = vadd.xlane.f32.xlu0 %v2425
      %v2427 = vpop.xlane.xlu0 %2426
      %v2428 = vld [vmem:[%s14] sm:$0xff]
      %v2429 = vld [vmem:[#allocation2] sm:$0x1]
      %v2431 = vlaneseq
      %v2432 = vshrl.u32 %v2431, 7
      %v2433 = vsub.s32 0, %v2432
      %v2434 = vrot.slane %v2429, %v2433
      %vm2436 = vcmask 130048
      %v2438 = vsel %vm2436, %v2428, 0
      %2440 = vmatprep.subr.mxu0 0.0
      %2441 = vmatpush1.msra.mxu0 0.0
      %2442 = vmatprep.subr.mxu0 0.0
      %2443 = vmatpush1.msra.mxu0 0.0
      %2444 = vmatprep.subr.mxu0 0.0
      %2445 = vmatpush1.msra.mxu0 0.0
      %2446 = vmatprep.subr.mxu0 0.0
      %2447 = vmatpush1.msra.mxu0 0.0
      %2448 = vmatprep.subr.mxu0 0.0
      %2449 = vmatpush1.msra.mxu0 0.0
      %2450 = vmatprep.subr.mxu0 0.0
      %2451 = vmatpush1.msra.mxu0 0.0
      %2452 = vmatprep.subr.mxu0 0.0
      %2453 = vmatpush1.msra.mxu0 0.0
      %2454 = vmatprep.subr.mxu0 0.0
      %2455 = vmatpush1.msra.mxu0 0.0
      %2456 = vmatprep.subr.mxu0 0.0
      %2457 = vmatpush1.msra.mxu0 0.0
      %2458 = vmatprep.subr.mxu0 0.0
      %2459 = vmatpush1.msra.mxu0 0.0
      %2460 = vmatprep.subr.mxu0 0.0
      %2461 = vmatpush1.msra.mxu0 0.0
      %2462 = vmatprep.subr.mxu0 0.0
      %2463 = vmatpush1.msra.mxu0 0.0
      %2464 = vmatprep.subr.mxu0 0.0
      %2465 = vmatpush1.msra.mxu0 0.0
      %2466 = vmatprep.subr.mxu0 0.0
      %2467 = vmatpush1.msra.mxu0 0.0
      %2468 = vmatprep.subr.mxu0 0.0
      %2469 = vmatpush1.msra.mxu0 %v2427
      %2470 = vmatprep.subr.mxu0 0.0
      %2471 = vmatpush1.msra.mxu0 %v2424
      %2472 = vmatprep.subr.mxu0 0.0
      %2473 = vmatpush2.msra.mxu0 0.0
      %2474 = vmatprep.subr.mxu0 0.0
      %2475 = vmatpush2.msra.mxu0 0.0
      %2476 = vmatprep.subr.mxu0 0.0
      %2477 = vmatpush2.msra.mxu0 0.0
      %2478 = vmatprep.subr.mxu0 0.0
      %2479 = vmatpush2.msra.mxu0 0.0
      %2480 = vmatprep.subr.mxu0 0.0
      %2481 = vmatpush2.msra.mxu0 0.0
      %2482 = vmatprep.subr.mxu0 0.0
      %2483 = vmatpush2.msra.mxu0 0.0
      %2484 = vmatprep.subr.mxu0 0.0
      %2485 = vmatpush2.msra.mxu0 0.0
      %2486 = vmatprep.subr.mxu0 0.0
      %2487 = vmatpush2.msra.mxu0 0.0
      %2488 = vmatprep.subr.mxu0 0.0
      %2489 = vmatpush2.msra.mxu0 0.0
      %2490 = vmatprep.subr.mxu0 0.0
      %2491 = vmatpush2.msra.mxu0 0.0
      %2492 = vmatprep.subr.mxu0 0.0
      %2493 = vmatpush2.msra.mxu0 0.0
      %2494 = vmatprep.subr.mxu0 0.0
      %2495 = vmatpush2.msra.mxu0 0.0
      %2496 = vmatprep.subr.mxu0 0.0
      %2497 = vmatpush2.msra.mxu0 0.0
      %2498 = vmatprep.subr.mxu0 0.0
      %2499 = vmatpush2.msra.mxu0 0.0
      %2500 = vmatprep.subr.mxu0 0.0
      %2501 = vmatpush2.msra.mxu0 0.0
      %2502 = vmatprep.subr.mxu0 0.0
      %2503 = vmatpush2.msra.mxu0 0.0
      %2504 = vmatprep.mubr.f32.mxu0 0.0
      %2505 = vmatmul.mubr.f32.gmra.mxu0 %v2438
      %v2506 = vpop.f32.mrf.mxu0
      %v2507 = vadd.f32 %v2434, %v2506
      %v2508 = vpop.f32.mrf.mxu0
      %2509 = vdwg.mxu0
      %v2510 = vxor.u32 %v2507, 2147483648
      %v2511 = vmul.f32 %v2510, 1.442695
      %v2512 = vpow.pop %v2511
      %v2513 = vadd.f32 %v2512, 1.0
      %v2514 = vrcp.pop %v2513
      %v2515 = vmul.f32 1.0, %v2514
      %vm2516 = vcmask 7168
      %2517 = vst.msk [vmem:[%s523] sm:$0xff] %vm2516, %v2515
      %p2518 = scmp.lt.s32.totalorder %s29, 1
      %s2519 = scalar_select %p2518, %s29, 1
      %s2520 = smul.addr %s2519, 8
      %s2521 = scalar_lea.vmem %s16, %s2520
      // Predicated region
      $region85: #{forward.1} parent=83 // pred_check
        %p2522 = pneg %p388
      $region86: #{forward.1} parent=83 // pred_check_branch
        %2524 = sbr.rel (%p2522) target = $region88
      $region87: #{forward.1} parent=83 // pred_region
        _
      $region88: #{forward.1} parent=83 // pred_fallthru
        _
    $region84: #{forward.1} parent=5 // pred_fallthru
      _
    %p2525 = scmp.le.s32.totalorder 2, %s24
    // Predicated region
    $region89: #{forward.1} parent=5 // pred_check
      %p2526 = pneg %p2525
    $region90: #{forward.1} parent=5 // pred_check_branch
      %2528 = sbr.rel (%p2526) target = $region92
    $region91: #{forward.1} parent=5 // pred_region
      %s2529 = ssub.s32 %s24, 2
      // Predicated region
      $region93: #{forward.1} parent=91 // pred_check
        %p2530 = pneg %p394
      $region94: #{forward.1} parent=91 // pred_check_branch
        %2532 = sbr.rel (%p2530) target = $region96
      $region95: #{forward.1} parent=91 // pred_region
        %p2533 = scmp.lt.s32.totalorder %s30, 1
        %s2534 = scalar_select %p2533, %s30, 1
        %s2535 = smul.addr %s2534, 8
        %s2536 = scalar_lea.vmem %s16, %s2535
      $region96: #{forward.1} parent=91 // pred_fallthru
        _
    $region92: #{forward.1} parent=5 // pred_fallthru
      _
  $region6: #{forward.1} parent=0 // loop_footer
    %s28 = sadd.s32 1, %s24
  $region7: #{forward.1} parent=0 // loop_footer_branch
    %23 = sbr.rel target = $region3
  $region8: #{forward.1} parent=0 // loop_exit
    _

</llo_original>
